<compile_context>
chip_gen: v7x
topology: tpu7x:2x2x1
jax: 0.10.0
libtpu: 0.0.40
codegen_flags: <defaults>
</compile_context>

<pallas_src>
import jax
import jax.numpy as jnp
from jax import lax
from jax.experimental import pallas as pl
from jax.experimental.pallas import tpu as pltpu

BN_EPS = 1e-3


def se_conv_bn_kernel(g_ref, w_ref, x_ref, gamma_ref, beta_ref, o_ref):
    # SE gate folded into the 1x1-conv weight (per input channel).
    gate = jax.nn.sigmoid(g_ref[...])                       # (1, Cin)
    wg = w_ref[...] * gate                                  # (Cout_blk, Cin)

    # 1x1 conv as a channel-major MXU matmul: (Cout_blk, Cin) @ (Cin, P).
    y = jnp.dot(wg, x_ref[...], preferred_element_type=jnp.float32)  # (Cout_blk, P)

    # Training-mode BatchNorm with batch statistics, single pass over y:
    # var = E[y^2] - E[y]^2 (clamped at 0), then fold scale/shift per channel.
    inv_p = 1.0 / y.shape[1]
    s1 = jnp.sum(y, axis=1, keepdims=True)                  # (Cout_blk, 1)
    s2 = jnp.sum(y * y, axis=1, keepdims=True)              # (Cout_blk, 1)
    mean = s1 * inv_p
    var = jnp.maximum(s2 * inv_p - mean * mean, 0.0)
    scale = lax.rsqrt(var + BN_EPS) * gamma_ref[...]        # (Cout_blk, 1)
    shift = beta_ref[...] - mean * scale                    # (Cout_blk, 1)
    o_ref[...] = (y * scale + shift).astype(o_ref.dtype)


@jax.jit
def forward(x491, x487, conv_weight, bn_gamma, bn_beta):
    N, Cin, H, W = x487.shape
    Cout = conv_weight.shape[0]
    assert N == 1, "kernel assumes batch size 1 (matches the reference module)"
    P = H * W

    # Free reshapes only — no NCHW<->NHWC transposes anywhere.
    x = x487.reshape(Cin, P)                  # (Cin, P)
    g = x491.reshape(1, Cin)                  # (1, Cin)
    w = conv_weight.reshape(Cout, Cin)        # (Cout, Cin)
    gamma = bn_gamma.reshape(Cout, 1)
    beta = bn_beta.reshape(Cout, 1)

    # Split Cout into 2 sublane-aligned blocks for the v7x megacore; BN stats
    # are per output channel so the split is exact (each block sees all pixels).
    cb = Cout // 2 if (Cout % 2 == 0 and (Cout // 2) % 8 == 0) else Cout
    grid = (Cout // cb,)

    out = pl.pallas_call(
        se_conv_bn_kernel,
        out_shape=jax.ShapeDtypeStruct((Cout, P), jnp.float32),
        grid=grid,
        in_specs=[
            pl.BlockSpec((1, Cin), lambda i: (0, 0)),       # gate logits
            pl.BlockSpec((cb, Cin), lambda i: (i, 0)),      # conv weight block
            pl.BlockSpec((Cin, P), lambda i: (0, 0)),       # activations (revisited)
            pl.BlockSpec((cb, 1), lambda i: (i, 0)),        # gamma block
            pl.BlockSpec((cb, 1), lambda i: (i, 0)),        # beta block
        ],
        out_specs=pl.BlockSpec((cb, P), lambda i: (i, 0)),
        compiler_params=pltpu.CompilerParams(
            dimension_semantics=("parallel",)),
    )(g, w, x, gamma, beta)

    # Free reshape back to NCHW.
    return out.reshape(N, Cout, H, W)


def reference(x491, x487, conv_weight, bn_gamma, bn_beta):
    gate = jax.nn.sigmoid(x491)
    x = gate * x487                                                # (N, Cin, H, W)
    w = conv_weight.reshape(conv_weight.shape[0], conv_weight.shape[1])
    y = jnp.einsum('nchw,oc->nohw', x, w)                          # 1x1 conv
    mean = jnp.mean(y, axis=(0, 2, 3), keepdims=True)
    var = jnp.mean((y - mean) ** 2, axis=(0, 2, 3), keepdims=True)
    y = (y - mean) / jnp.sqrt(var + BN_EPS)
    return y * bn_gamma.reshape(1, -1, 1, 1) + bn_beta.reshape(1, -1, 1, 1)


if __name__ == "__main__":
    N, Cin, H, W = 1, 1344, 14, 14
    Cout = 224

    key = jax.random.PRNGKey(0)
    k1, k2, k3, k4, k5 = jax.random.split(key, 5)

    x487 = jax.random.normal(k1, (N, Cin, H, W), dtype=jnp.float32)
    x491 = jax.random.normal(k2, (N, Cin, 1, 1), dtype=jnp.float32)

    # deterministic parameter init (synthetic; not a checkpoint load)
    conv_weight = jax.random.normal(k3, (Cout, Cin, 1, 1), dtype=jnp.float32) * 0.02
    bn_gamma = 1.0 + 0.1 * jax.random.normal(k4, (Cout,), dtype=jnp.float32)
    bn_beta = 0.1 * jax.random.normal(k5, (Cout,), dtype=jnp.float32)

    # TODO(synk): BatchNorm2d running_mean/var (momentum) update is not modeled;
    # only the forward output (batch statistics) is computed, as in the reference.
    out = forward(x491, x487, conv_weight, bn_gamma, bn_beta)
    out = jax.block_until_ready(out)

    ref = reference(x491, x487, conv_weight, bn_gamma, bn_beta)
    assert out.shape == (N, Cout, H, W), out.shape
    assert jnp.allclose(out, ref, atol=1e-3, rtol=1e-3), float(jnp.max(jnp.abs(out - ref)))

    print("KERNEL_OK")
</pallas_src>

<mosaic_0001>
module attributes {stable_mosaic.version = 11 : i64} {
  func.func @se_conv_bn_kernel(%arg0: i32, %arg1: memref<1x1344xf32, #tpu.memory_space<vmem>>, %arg2: memref<112x1344xf32, #tpu.memory_space<vmem>>, %arg3: memref<1344x196xf32, #tpu.memory_space<vmem>>, %arg4: memref<112x1xf32, #tpu.memory_space<vmem>>, %arg5: memref<112x1xf32, #tpu.memory_space<vmem>>, %arg6: memref<112x196xf32, #tpu.memory_space<vmem>>) attributes {dimension_semantics = [#tpu.dimension_semantics<parallel>], iteration_bounds = array<i64: 2>, scalar_prefetch = 0 : i64, scratch_operands = 0 : i64, tpu.core_type = #tpu.core_type<tc>, window_params = [{pipeline_mode = #tpu.pipeline_mode<synchronous>, transform_indices = @transform_0, window_bounds = array<i64: 1, 1344>}, {transform_indices = @transform_1, window_bounds = array<i64: 112, 1344>}, {pipeline_mode = #tpu.pipeline_mode<synchronous>, transform_indices = @transform_2, window_bounds = array<i64: 1344, 196>}, {transform_indices = @transform_3, window_bounds = array<i64: 112, 1>}, {transform_indices = @transform_4, window_bounds = array<i64: 112, 1>}, {transform_indices = @transform_5, window_bounds = array<i64: 112, 196>}]} {
    %c0 = arith.constant 0 : index
    %c0_0 = arith.constant 0 : index
    %0 = vector.load %arg1[%c0, %c0_0] : memref<1x1344xf32, #tpu.memory_space<vmem>>, vector<1x1344xf32>
    %1 = arith.negf %0 : vector<1x1344xf32>
    %2 = math.exp %1 : vector<1x1344xf32>
    %cst = arith.constant 1.000000e+00 : f32
    %3 = vector.broadcast %cst : f32 to vector<1x1344xf32>
    %4 = arith.addf %3, %2 : vector<1x1344xf32>
    %5 = arith.divf %3, %4 : vector<1x1344xf32>
    %c0_1 = arith.constant 0 : index
    %c0_2 = arith.constant 0 : index
    %6 = vector.load %arg2[%c0_1, %c0_2] : memref<112x1344xf32, #tpu.memory_space<vmem>>, vector<112x1344xf32>
    %7 = vector.broadcast %5 : vector<1x1344xf32> to vector<112x1344xf32>
    %8 = arith.mulf %6, %7 : vector<112x1344xf32>
    %c0_3 = arith.constant 0 : index
    %c0_4 = arith.constant 0 : index
    %9 = vector.load %arg3[%c0_3, %c0_4] : memref<1344x196xf32, #tpu.memory_space<vmem>>, vector<1344x196xf32>
    %cst_5 = arith.constant dense<0.000000e+00> : vector<112x196xf32>
    %10 = tpu.matmul %8, %9, %cst_5 {dimension_numbers = #tpu.dot_dimension_numbers<[1], [0], [0], [1], [0, 0, 1, 1], [], []>} : vector<112x1344xf32>, vector<1344x196xf32>, vector<112x196xf32> -> vector<112x196xf32>
    %cst_6 = arith.constant dense<0.000000e+00> : vector<112xf32>
    %11 = vector.multi_reduction <add>, %10, %cst_6 [1] : vector<112x196xf32> to vector<112xf32>
    %12 = vector.shape_cast %11 : vector<112xf32> to vector<112x1xf32>
    %13 = arith.mulf %10, %10 : vector<112x196xf32>
    %cst_7 = arith.constant dense<0.000000e+00> : vector<112xf32>
    %14 = vector.multi_reduction <add>, %13, %cst_7 [1] : vector<112x196xf32> to vector<112xf32>
    %15 = vector.shape_cast %14 : vector<112xf32> to vector<112x1xf32>
    %cst_8 = arith.constant 0.00510204071 : f32
    %16 = vector.broadcast %cst_8 : f32 to vector<112x1xf32>
    %17 = arith.mulf %12, %16 : vector<112x1xf32>
    %cst_9 = arith.constant 0.00510204071 : f32
    %18 = vector.broadcast %cst_9 : f32 to vector<112x1xf32>
    %19 = arith.mulf %15, %18 : vector<112x1xf32>
    %20 = arith.mulf %17, %17 : vector<112x1xf32>
    %21 = arith.subf %19, %20 : vector<112x1xf32>
    %cst_10 = arith.constant 0.000000e+00 : f32
    %22 = vector.broadcast %cst_10 : f32 to vector<112x1xf32>
    %23 = arith.maximumf %21, %22 : vector<112x1xf32>
    %cst_11 = arith.constant 1.000000e-03 : f32
    %24 = vector.broadcast %cst_11 : f32 to vector<112x1xf32>
    %25 = arith.addf %23, %24 : vector<112x1xf32>
    %26 = math.rsqrt %25 : vector<112x1xf32>
    %c0_12 = arith.constant 0 : index
    %c0_13 = arith.constant 0 : index
    %27 = vector.load %arg4[%c0_12, %c0_13] : memref<112x1xf32, #tpu.memory_space<vmem>>, vector<112x1xf32>
    %28 = arith.mulf %26, %27 : vector<112x1xf32>
    %c0_14 = arith.constant 0 : index
    %c0_15 = arith.constant 0 : index
    %29 = vector.load %arg5[%c0_14, %c0_15] : memref<112x1xf32, #tpu.memory_space<vmem>>, vector<112x1xf32>
    %30 = arith.mulf %17, %28 : vector<112x1xf32>
    %31 = arith.subf %29, %30 : vector<112x1xf32>
    %32 = vector.broadcast %28 : vector<112x1xf32> to vector<112x196xf32>
    %33 = arith.mulf %10, %32 : vector<112x196xf32>
    %34 = vector.broadcast %31 : vector<112x1xf32> to vector<112x196xf32>
    %35 = arith.addf %33, %34 : vector<112x196xf32>
    %c0_16 = arith.constant 0 : index
    %c0_17 = arith.constant 0 : index
    %36 = vector.load %arg6[%c0_16, %c0_17] : memref<112x196xf32, #tpu.memory_space<vmem>>, vector<112x196xf32>
    tpu.vector_store %arg6[%c0_16, %c0_17], %35 {strides = array<i32>} : memref<112x196xf32, #tpu.memory_space<vmem>>, vector<112x196xf32>,
    return
  }
  func.func @transform_0(%arg0: i32) -> (i32, i32) {
    %c0_i32 = arith.constant 0 : i32
    %c0_i32_0 = arith.constant 0 : i32
    %c0_i32_1 = arith.constant 0 : i32
    return %c0_i32, %c0_i32_0 : i32, i32
  }
  func.func @transform_1(%arg0: i32) -> (i32, i32) {
    %c0_i32 = arith.constant 0 : i32
    %c0_i32_0 = arith.constant 0 : i32
    return %arg0, %c0_i32 : i32, i32
  }
  func.func @transform_2(%arg0: i32) -> (i32, i32) {
    %c0_i32 = arith.constant 0 : i32
    %c0_i32_0 = arith.constant 0 : i32
    %c0_i32_1 = arith.constant 0 : i32
    return %c0_i32, %c0_i32_0 : i32, i32
  }
  func.func @transform_3(%arg0: i32) -> (i32, i32) {
    %c0_i32 = arith.constant 0 : i32
    %c0_i32_0 = arith.constant 0 : i32
    return %arg0, %c0_i32 : i32, i32
  }
  func.func @transform_4(%arg0: i32) -> (i32, i32) {
    %c0_i32 = arith.constant 0 : i32
    %c0_i32_0 = arith.constant 0 : i32
    return %arg0, %c0_i32 : i32, i32
  }
  func.func @transform_5(%arg0: i32) -> (i32, i32) {
    %c0_i32 = arith.constant 0 : i32
    %c0_i32_0 = arith.constant 0 : i32
    return %arg0, %c0_i32 : i32, i32
  }
}

</mosaic_0001>

<llo_original>
// kernel: forward.1
$region0: #{forward.1}
  #allocation0 [shape = 'u32[]', space=smem, size = 0x4, offset = 0x4, fixed_abs, tag = 'smem constant byte address 0x4 - core index']
  #allocation1 [shape = 'u32[144,128]{1,0:T(1,128)}', space=vmem, size = 0x12000, scoped, tag = 'internal scratch']
  %s0 = inlined_call_operand.vmem [shape: f32[1,1344], index: 0, kind: input, shape index: {}]
  %s1 = inlined_call_operand.vmem [shape: f32[224,1344], index: 1, kind: input, shape index: {}]
  %s2 = inlined_call_operand.vmem [shape: f32[1344,196], index: 2, kind: input, shape index: {}]
  %s3 = inlined_call_operand.vmem [shape: f32[224,1], index: 3, kind: input, shape index: {}]
  %s4 = inlined_call_operand.vmem [shape: f32[224,1], index: 4, kind: input, shape index: {}]
  %s5 = inlined_call_operand.vmem [shape: f32[224,196], index: 5, kind: output, shape index: {}]
  %s6 = sld [smem:[#allocation0]]
  $region53: #{forward.1} parent=0
    _
  %s8 = ssub.s32 1, %s6
  %s9 = scalar_select 0, %s8, %s6
  loop: start=0, step=1, limit=4
  $region2: #{forward.1} parent=0 // loop_pre_header
    _
  $region3: #{forward.1} parent=0 // loop_header
    %s11 = sphi 0, %s15
    %p12 = scmp.ge.s32.totalorder %s11, 4
    %s19 = sphi 0, %s19
    %s21 = sphi 0, %s19
    %s22 = sphi 0, %s21
    %s36 = sphi 0, %s22
    %s42 = sphi 0, %s44
    %s45 = sphi 0, %s42
    %s46 = sphi 0, %s45
    %s62 = sphi 0, %s46
    %s66 = sphi 0, %s66
    %s68 = sphi 0, %s66
    %s69 = sphi 0, %s68
    %s83 = sphi 0, %s69
    %s89 = sphi 0, %s91
    %s92 = sphi 0, %s89
    %s93 = sphi 0, %s92
    %s109 = sphi 0, %s93
    %s115 = sphi 0, %s117
    %s118 = sphi 0, %s115
    %s119 = sphi 0, %s118
    %s135 = sphi 0, %s119
    %s141 = sphi 0, %s143
    %s144 = sphi 0, %s141
    %s145 = sphi 0, %s144
    %s161 = sphi 0, %s145
  $region4: #{forward.1} parent=0 // loop_header_branch
    %14 = sbr.rel (%p12) target = $region8
  $region5: #{forward.1} parent=0 // loop_body
    %s16 = ssub.s32 %s11, 1
    %s17 = ssub.s32 %s11, 2
    %s18 = sadd.s32 %s11, 1
    %s20 = sadd.s32 %s19, 1
    %p23 = scmp.eq.s32.totalorder %s11, 1
    %p24 = scmp.ne.s32.totalorder %s19, %s21
    %p25 = scmp.eq.s32.totalorder %s11, 0
    %p26 = por %p24, %p25
    %p27 = scmp.ne.s32.totalorder %s19, %s21
    %p28 = scmp.eq.s32.totalorder %s16, 1
    %p29 = por %p27, %p28
    %p30 = scmp.ne.s32.totalorder %s21, %s22
    %p31 = scmp.eq.s32.totalorder %s16, 0
    %p32 = por %p30, %p31
    %p33 = scmp.ne.s32.totalorder %s21, %s22
    %p34 = scmp.eq.s32.totalorder %s17, 1
    %p35 = por %p33, %p34
    %p37 = scmp.ne.s32.totalorder %s22, %s36
    %p38 = scmp.eq.s32.totalorder %s17, 0
    %p39 = por %p37, %p38
    %s40 = ssub.s32 %s11, %s18
    %p41 = scmp.eq.s32.totalorder %s40, 0
    %s43 = sadd.s32 %s42, 1
    %s44 = scalar_select %p41, %s42, %s43
    %p47 = pneg %p41
    %p48 = scmp.eq.s32.totalorder %s11, 1
    %p49 = por %p47, %p48
    %p50 = scmp.ne.s32.totalorder %s42, %s45
    %p51 = scmp.eq.s32.totalorder %s11, 0
    %p52 = por %p50, %p51
    %p53 = scmp.ne.s32.totalorder %s42, %s45
    %p54 = scmp.eq.s32.totalorder %s16, 1
    %p55 = por %p53, %p54
    %p56 = scmp.ne.s32.totalorder %s45, %s46
    %p57 = scmp.eq.s32.totalorder %s16, 0
    %p58 = por %p56, %p57
    %p59 = scmp.ne.s32.totalorder %s45, %s46
    %p60 = scmp.eq.s32.totalorder %s17, 1
    %p61 = por %p59, %p60
    %p63 = scmp.ne.s32.totalorder %s46, %s62
    %p64 = scmp.eq.s32.totalorder %s17, 0
    %p65 = por %p63, %p64
    %s67 = sadd.s32 %s66, 1
    %p70 = scmp.eq.s32.totalorder %s11, 1
    %p71 = scmp.ne.s32.totalorder %s66, %s68
    %p72 = scmp.eq.s32.totalorder %s11, 0
    %p73 = por %p71, %p72
    %p74 = scmp.ne.s32.totalorder %s66, %s68
    %p75 = scmp.eq.s32.totalorder %s16, 1
    %p76 = por %p74, %p75
    %p77 = scmp.ne.s32.totalorder %s68, %s69
    %p78 = scmp.eq.s32.totalorder %s16, 0
    %p79 = por %p77, %p78
    %p80 = scmp.ne.s32.totalorder %s68, %s69
    %p81 = scmp.eq.s32.totalorder %s17, 1
    %p82 = por %p80, %p81
    %p84 = scmp.ne.s32.totalorder %s69, %s83
    %p85 = scmp.eq.s32.totalorder %s17, 0
    %p86 = por %p84, %p85
    %s87 = ssub.s32 %s11, %s18
    %p88 = scmp.eq.s32.totalorder %s87, 0
    %s90 = sadd.s32 %s89, 1
    %s91 = scalar_select %p88, %s89, %s90
    %p94 = pneg %p88
    %p95 = scmp.eq.s32.totalorder %s11, 1
    %p96 = por %p94, %p95
    %p97 = scmp.ne.s32.totalorder %s89, %s92
    %p98 = scmp.eq.s32.totalorder %s11, 0
    %p99 = por %p97, %p98
    %p100 = scmp.ne.s32.totalorder %s89, %s92
    %p101 = scmp.eq.s32.totalorder %s16, 1
    %p102 = por %p100, %p101
    %p103 = scmp.ne.s32.totalorder %s92, %s93
    %p104 = scmp.eq.s32.totalorder %s16, 0
    %p105 = por %p103, %p104
    %p106 = scmp.ne.s32.totalorder %s92, %s93
    %p107 = scmp.eq.s32.totalorder %s17, 1
    %p108 = por %p106, %p107
    %p110 = scmp.ne.s32.totalorder %s93, %s109
    %p111 = scmp.eq.s32.totalorder %s17, 0
    %p112 = por %p110, %p111
    %s113 = ssub.s32 %s11, %s18
    %p114 = scmp.eq.s32.totalorder %s113, 0
    %s116 = sadd.s32 %s115, 1
    %s117 = scalar_select %p114, %s115, %s116
    %p120 = pneg %p114
    %p121 = scmp.eq.s32.totalorder %s11, 1
    %p122 = por %p120, %p121
    %p123 = scmp.ne.s32.totalorder %s115, %s118
    %p124 = scmp.eq.s32.totalorder %s11, 0
    %p125 = por %p123, %p124
    %p126 = scmp.ne.s32.totalorder %s115, %s118
    %p127 = scmp.eq.s32.totalorder %s16, 1
    %p128 = por %p126, %p127
    %p129 = scmp.ne.s32.totalorder %s118, %s119
    %p130 = scmp.eq.s32.totalorder %s16, 0
    %p131 = por %p129, %p130
    %p132 = scmp.ne.s32.totalorder %s118, %s119
    %p133 = scmp.eq.s32.totalorder %s17, 1
    %p134 = por %p132, %p133
    %p136 = scmp.ne.s32.totalorder %s119, %s135
    %p137 = scmp.eq.s32.totalorder %s17, 0
    %p138 = por %p136, %p137
    %s139 = ssub.s32 %s11, %s18
    %p140 = scmp.eq.s32.totalorder %s139, 0
    %s142 = sadd.s32 %s141, 1
    %s143 = scalar_select %p140, %s141, %s142
    %p146 = pneg %p140
    %p147 = scmp.eq.s32.totalorder %s11, 1
    %p148 = por %p146, %p147
    %p149 = scmp.ne.s32.totalorder %s141, %s144
    %p150 = scmp.eq.s32.totalorder %s11, 0
    %p151 = por %p149, %p150
    %p152 = scmp.ne.s32.totalorder %s141, %s144
    %p153 = scmp.eq.s32.totalorder %s16, 1
    %p154 = por %p152, %p153
    %p155 = scmp.ne.s32.totalorder %s144, %s145
    %p156 = scmp.eq.s32.totalorder %s16, 0
    %p157 = por %p155, %p156
    %p158 = scmp.ne.s32.totalorder %s144, %s145
    %p159 = scmp.eq.s32.totalorder %s17, 1
    %p160 = por %p158, %p159
    %p162 = scmp.ne.s32.totalorder %s145, %s161
    %p163 = scmp.eq.s32.totalorder %s17, 0
    %p164 = por %p162, %p163
    %p165 = scmp.le.s32.totalorder 1, %s11
    %p166 = scmp.lt.s32.totalorder %s11, 3
    %p167 = pnand %p165, %p166
    %p168 = pneg %p167
    // Predicated region
    $region9: #{forward.1} parent=5 // pred_check
      _
    $region10: #{forward.1} parent=5 // pred_check_branch
      %170 = sbr.rel (%p167) target = $region12
    $region11: #{forward.1} parent=5 // pred_region
      %s171 = ssub.s32 %s11, 1
      // Predicated region
      $region13: #{forward.1} parent=11 // pred_check
        %p172 = pneg %p32
      $region14: #{forward.1} parent=11 // pred_check_branch
        %174 = sbr.rel (%p172) target = $region16
      $region15: #{forward.1} parent=11 // pred_region
        _
      $region16: #{forward.1} parent=11 // pred_fallthru
        _
      // Predicated region
      $region17: #{forward.1} parent=11 // pred_check
        %p175 = pneg %p79
      $region18: #{forward.1} parent=11 // pred_check_branch
        %177 = sbr.rel (%p175) target = $region20
      $region19: #{forward.1} parent=11 // pred_region
        _
      $region20: #{forward.1} parent=11 // pred_fallthru
        _
    $region12: #{forward.1} parent=5 // pred_fallthru
      _
    %p178 = scmp.lt.s32.totalorder %s11, 2
    // Predicated region
    $region21: #{forward.1} parent=5 // pred_check
      %p179 = pneg %p178
    $region22: #{forward.1} parent=5 // pred_check_branch
      %181 = sbr.rel (%p179) target = $region24
    $region23: #{forward.1} parent=5 // pred_region
      // Predicated region
      $region25: #{forward.1} parent=23 // pred_check
        %p182 = pneg %p52
      $region26: #{forward.1} parent=23 // pred_check_branch
        %184 = sbr.rel (%p182) target = $region28
      $region27: #{forward.1} parent=23 // pred_region
        %s185 = smul.u32 14, %s11
        %p186 = scmp.lt.s32.totalorder %s185, 27
        %s187 = scalar_select %p186, %s185, 27
        %s188 = smul.addr %s187, 11
        %s189 = smul.addr %s188, 8
        %s190 = scalar_lea.vmem %s1, %s189
        %s191 = smul.u32 14, %s11
      $region28: #{forward.1} parent=23 // pred_fallthru
        _
      // Predicated region
      $region29: #{forward.1} parent=23 // pred_check
        %p192 = pneg %p99
      $region30: #{forward.1} parent=23 // pred_check_branch
        %194 = sbr.rel (%p192) target = $region32
      $region31: #{forward.1} parent=23 // pred_region
        %s195 = smul.u32 14, %s11
        %p196 = scmp.lt.s32.totalorder %s195, 27
        %s197 = scalar_select %p196, %s195, 27
        %s198 = smul.addr %s197, 8
        %s199 = scalar_lea.vmem %s3, %s198
        %s200 = smul.u32 14, %s11
      $region32: #{forward.1} parent=23 // pred_fallthru
        _
      // Predicated region
      $region33: #{forward.1} parent=23 // pred_check
        %p201 = pneg %p125
      $region34: #{forward.1} parent=23 // pred_check_branch
        %203 = sbr.rel (%p201) target = $region36
      $region35: #{forward.1} parent=23 // pred_region
        %s204 = smul.u32 14, %s11
        %p205 = scmp.lt.s32.totalorder %s204, 27
        %s206 = scalar_select %p205, %s204, 27
        %s207 = smul.addr %s206, 8
        %s208 = scalar_lea.vmem %s4, %s207
        %s209 = smul.u32 14, %s11
      $region36: #{forward.1} parent=23 // pred_fallthru
        _
    $region24: #{forward.1} parent=5 // pred_fallthru
      _
    %p210 = scmp.le.s32.totalorder 1, %s11
    %p211 = scmp.lt.s32.totalorder %s11, 3
    %p212 = pnand %p210, %p211
    %p213 = pneg %p212
    // Predicated region
    $region37: #{forward.1} parent=5 // pred_check
      _
    $region38: #{forward.1} parent=5 // pred_check_branch
      %215 = sbr.rel (%p212) target = $region40
    $region39: #{forward.1} parent=5 // pred_region
      %s216 = ssub.s32 %s11, 1
      %p217 = pneg %p32
      %p218 = pneg %p29
      %s219 = smul.u32 14, %s16
      %p220 = scmp.lt.s32.totalorder %s219, 27
      %s221 = scalar_select %p220, %s219, 27
      %s222 = smul.addr %s221, 11
      %s223 = smul.addr %s222, 8
      %s224 = scalar_lea.vmem %s1, %s223
      %p225 = pneg %p58
      %p226 = pneg %p55
      %p227 = pneg %p79
      %p228 = pneg %p76
      %s229 = smul.u32 14, %s16
      %p230 = scmp.lt.s32.totalorder %s229, 27
      %s231 = scalar_select %p230, %s229, 27
      %s232 = smul.addr %s231, 8
      %s233 = scalar_lea.vmem %s3, %s232
      %p234 = pneg %p105
      %p235 = pneg %p102
      %s236 = smul.u32 14, %s16
      %p237 = scmp.lt.s32.totalorder %s236, 27
      %s238 = scalar_select %p237, %s236, 27
      %s239 = smul.addr %s238, 8
      %s240 = scalar_lea.vmem %s4, %s239
      %p241 = pneg %p131
      %p242 = pneg %p128
      %p243 = pneg %p157
      %p244 = pneg %p154
      %s245 = smul.u32 14, %s16
      %p246 = scmp.lt.s32.totalorder %s245, 27
      %s247 = scalar_select %p246, %s245, 27
      %s248 = smul.addr %s247, 2
      %s249 = smul.addr %s248, 8
      %s250 = scalar_lea.vmem %s5, %s249
      %s251 = smul.u32 14, %s16
      %p252 = scmp.lt.s32.totalorder %s251, 27
      %s253 = scalar_select %p252, %s251, 27
      %s254 = smul.addr %s253, 11
      %s255 = smul.addr %s254, 8
      %s256 = scalar_lea.vmem %s1, %s255
      %s257 = smul.u32 14, %s16
      %s258 = smul.u32 14, %s16
      %p259 = scmp.lt.s32.totalorder %s258, 27
      %s260 = scalar_select %p259, %s258, 27
      %s261 = smul.addr %s260, 8
      %s262 = scalar_lea.vmem %s3, %s261
      %s263 = smul.u32 14, %s16
      %s264 = smul.u32 14, %s16
      %p265 = scmp.lt.s32.totalorder %s264, 27
      %s266 = scalar_select %p265, %s264, 27
      %s267 = smul.addr %s266, 8
      %s268 = scalar_lea.vmem %s4, %s267
      %s269 = smul.u32 14, %s16
      %s270 = smul.u32 14, %s16
      %p271 = scmp.lt.s32.totalorder %s270, 27
      %s272 = scalar_select %p271, %s270, 27
      %s273 = smul.addr %s272, 2
      %s274 = smul.addr %s273, 8
      %s275 = scalar_lea.vmem %s5, %s274
      %s276 = smul.u32 14, %s16
      %v277 = vld [vmem:[%s0] sm:$0xff]
      %v278 = vld [vmem:[%s0 + $0x8] sm:$0x7]
      %v279 = vxor.u32 %v277, 2147483648
      %v280 = vxor.u32 %v278, 2147483648
      %v281 = vmul.f32 %v279, 1.442695
      %v282 = vpow.pop %v281
      %v283 = vmul.f32 %v280, 1.442695
      %v284 = vpow.pop %v283
      %v285 = vadd.f32 %v282, 1.0
      %v286 = vadd.f32 %v284, 1.0
      %v287 = vrcp.pop %v285
      %v288 = vmul.f32 1.0, %v287
      %v289 = vrcp.pop %v286
      %v290 = vmul.f32 1.0, %v289
      %v291 = vld [vmem:[%s256] sm:$0xff]
      %v292 = vld [vmem:[%s256 + $0x8] sm:$0xff]
      %v293 = vld [vmem:[%s256 + $0x10] sm:$0xff]
      %v294 = vld [vmem:[%s256 + $0x18] sm:$0xff]
      %v295 = vld [vmem:[%s256 + $0x20] sm:$0xff]
      %v296 = vld [vmem:[%s256 + $0x28] sm:$0xff]
      %v297 = vld [vmem:[%s256 + $0x30] sm:$0xff]
      %v298 = vld [vmem:[%s256 + $0x38] sm:$0xff]
      %v299 = vld [vmem:[%s256 + $0x40] sm:$0xff]
      %v300 = vld [vmem:[%s256 + $0x48] sm:$0xff]
      %v301 = vld [vmem:[%s256 + $0x50] sm:$0xff]
      %v302 = vld [vmem:[%s256 + $0x58] sm:$0xff]
      %v303 = vld [vmem:[%s256 + $0x60] sm:$0xff]
      %v304 = vld [vmem:[%s256 + $0x68] sm:$0xff]
      %v305 = vld [vmem:[%s256 + $0x70] sm:$0xff]
      %v306 = vld [vmem:[%s256 + $0x78] sm:$0xff]
      %v307 = vld [vmem:[%s256 + $0x80] sm:$0xff]
      %v308 = vld [vmem:[%s256 + $0x88] sm:$0xff]
      %v309 = vld [vmem:[%s256 + $0x90] sm:$0xff]
      %v310 = vld [vmem:[%s256 + $0x98] sm:$0xff]
      %v311 = vld [vmem:[%s256 + $0xa0] sm:$0xff]
      %v312 = vld [vmem:[%s256 + $0xa8] sm:$0xff]
      %v313 = vld [vmem:[%s256 + $0xb0] sm:$0xff]
      %v314 = vld [vmem:[%s256 + $0xb8] sm:$0xff]
      %v315 = vld [vmem:[%s256 + $0xc0] sm:$0xff]
      %v316 = vld [vmem:[%s256 + $0xc8] sm:$0xff]
      %v317 = vld [vmem:[%s256 + $0xd0] sm:$0xff]
      %v318 = vld [vmem:[%s256 + $0xd8] sm:$0xff]
      %v319 = vld [vmem:[%s256 + $0xe0] sm:$0xff]
      %v320 = vld [vmem:[%s256 + $0xe8] sm:$0xff]
      %v321 = vld [vmem:[%s256 + $0xf0] sm:$0xff]
      %v322 = vld [vmem:[%s256 + $0xf8] sm:$0xff]
      %v323 = vld [vmem:[%s256 + $0x100] sm:$0xff]
      %v324 = vld [vmem:[%s256 + $0x108] sm:$0xff]
      %v325 = vld [vmem:[%s256 + $0x110] sm:$0xff]
      %v326 = vld [vmem:[%s256 + $0x118] sm:$0xff]
      %v327 = vld [vmem:[%s256 + $0x120] sm:$0xff]
      %v328 = vld [vmem:[%s256 + $0x128] sm:$0xff]
      %v329 = vld [vmem:[%s256 + $0x130] sm:$0xff]
      %v330 = vld [vmem:[%s256 + $0x138] sm:$0xff]
      %v331 = vld [vmem:[%s256 + $0x140] sm:$0xff]
      %v332 = vld [vmem:[%s256 + $0x148] sm:$0xff]
      %v333 = vld [vmem:[%s256 + $0x150] sm:$0xff]
      %v334 = vld [vmem:[%s256 + $0x158] sm:$0xff]
      %v335 = vld [vmem:[%s256 + $0x160] sm:$0xff]
      %v336 = vld [vmem:[%s256 + $0x168] sm:$0xff]
      %v337 = vld [vmem:[%s256 + $0x170] sm:$0xff]
      %v338 = vld [vmem:[%s256 + $0x178] sm:$0xff]
      %v339 = vld [vmem:[%s256 + $0x180] sm:$0xff]
      %v340 = vld [vmem:[%s256 + $0x188] sm:$0xff]
      %v341 = vld [vmem:[%s256 + $0x190] sm:$0xff]
      %v342 = vld [vmem:[%s256 + $0x198] sm:$0xff]
      %v343 = vld [vmem:[%s256 + $0x1a0] sm:$0xff]
      %v344 = vld [vmem:[%s256 + $0x1a8] sm:$0xff]
      %v345 = vld [vmem:[%s256 + $0x1b0] sm:$0xff]
      %v346 = vld [vmem:[%s256 + $0x1b8] sm:$0xff]
      %v347 = vld [vmem:[%s256 + $0x1c0] sm:$0xff]
      %v348 = vld [vmem:[%s256 + $0x1c8] sm:$0xff]
      %v349 = vld [vmem:[%s256 + $0x1d0] sm:$0xff]
      %v350 = vld [vmem:[%s256 + $0x1d8] sm:$0xff]
      %v351 = vld [vmem:[%s256 + $0x1e0] sm:$0xff]
      %v352 = vld [vmem:[%s256 + $0x1e8] sm:$0xff]
      %v353 = vld [vmem:[%s256 + $0x1f0] sm:$0xff]
      %v354 = vld [vmem:[%s256 + $0x1f8] sm:$0xff]
      %v355 = vld [vmem:[%s256 + $0x200] sm:$0xff]
      %v356 = vld [vmem:[%s256 + $0x208] sm:$0xff]
      %v357 = vld [vmem:[%s256 + $0x210] sm:$0xff]
      %v358 = vld [vmem:[%s256 + $0x218] sm:$0xff]
      %v359 = vld [vmem:[%s256 + $0x220] sm:$0xff]
      %v360 = vld [vmem:[%s256 + $0x228] sm:$0xff]
      %v361 = vld [vmem:[%s256 + $0x230] sm:$0xff]
      %v362 = vld [vmem:[%s256 + $0x238] sm:$0xff]
      %v363 = vld [vmem:[%s256 + $0x240] sm:$0xff]
      %v364 = vld [vmem:[%s256 + $0x248] sm:$0xff]
      %v365 = vld [vmem:[%s256 + $0x250] sm:$0xff]
      %v366 = vld [vmem:[%s256 + $0x258] sm:$0xff]
      %v367 = vld [vmem:[%s256 + $0x260] sm:$0xff]
      %v368 = vld [vmem:[%s256 + $0x268] sm:$0xff]
      %v369 = vld [vmem:[%s256 + $0x270] sm:$0xff]
      %v370 = vld [vmem:[%s256 + $0x278] sm:$0xff]
      %v371 = vld [vmem:[%s256 + $0x280] sm:$0xff]
      %v372 = vld [vmem:[%s256 + $0x288] sm:$0xff]
      %v373 = vld [vmem:[%s256 + $0x290] sm:$0xff]
      %v374 = vld [vmem:[%s256 + $0x298] sm:$0xff]
      %v375 = vld [vmem:[%s256 + $0x2a0] sm:$0xff]
      %v376 = vld [vmem:[%s256 + $0x2a8] sm:$0xff]
      %v377 = vld [vmem:[%s256 + $0x2b0] sm:$0xff]
      %v378 = vld [vmem:[%s256 + $0x2b8] sm:$0xff]
      %v379 = vld [vmem:[%s256 + $0x2c0] sm:$0xff]
      %v380 = vld [vmem:[%s256 + $0x2c8] sm:$0xff]
      %v381 = vld [vmem:[%s256 + $0x2d0] sm:$0xff]
      %v382 = vld [vmem:[%s256 + $0x2d8] sm:$0xff]
      %v383 = vld [vmem:[%s256 + $0x2e0] sm:$0xff]
      %v384 = vld [vmem:[%s256 + $0x2e8] sm:$0xff]
      %v385 = vld [vmem:[%s256 + $0x2f0] sm:$0xff]
      %v386 = vld [vmem:[%s256 + $0x2f8] sm:$0xff]
      %v387 = vld [vmem:[%s256 + $0x300] sm:$0xff]
      %v388 = vld [vmem:[%s256 + $0x308] sm:$0xff]
      %v389 = vld [vmem:[%s256 + $0x310] sm:$0xff]
      %v390 = vld [vmem:[%s256 + $0x318] sm:$0xff]
      %v391 = vld [vmem:[%s256 + $0x320] sm:$0xff]
      %v392 = vld [vmem:[%s256 + $0x328] sm:$0xff]
      %v393 = vld [vmem:[%s256 + $0x330] sm:$0xff]
      %v394 = vld [vmem:[%s256 + $0x338] sm:$0xff]
      %v395 = vld [vmem:[%s256 + $0x340] sm:$0xff]
      %v396 = vld [vmem:[%s256 + $0x348] sm:$0xff]
      %v397 = vld [vmem:[%s256 + $0x350] sm:$0xff]
      %v398 = vld [vmem:[%s256 + $0x358] sm:$0xff]
      %v399 = vld [vmem:[%s256 + $0x360] sm:$0xff]
      %v400 = vld [vmem:[%s256 + $0x368] sm:$0xff]
      %v401 = vld [vmem:[%s256 + $0x370] sm:$0xff]
      %v402 = vld [vmem:[%s256 + $0x378] sm:$0xff]
      %v403 = vld [vmem:[%s256 + $0x380] sm:$0xff]
      %v404 = vld [vmem:[%s256 + $0x388] sm:$0xff]
      %v405 = vld [vmem:[%s256 + $0x390] sm:$0xff]
      %v406 = vld [vmem:[%s256 + $0x398] sm:$0xff]
      %v407 = vld [vmem:[%s256 + $0x3a0] sm:$0xff]
      %v408 = vld [vmem:[%s256 + $0x3a8] sm:$0xff]
      %v409 = vld [vmem:[%s256 + $0x3b0] sm:$0xff]
      %v410 = vld [vmem:[%s256 + $0x3b8] sm:$0xff]
      %v411 = vld [vmem:[%s256 + $0x3c0] sm:$0xff]
      %v412 = vld [vmem:[%s256 + $0x3c8] sm:$0xff]
      %v413 = vld [vmem:[%s256 + $0x3d0] sm:$0xff]
      %v414 = vld [vmem:[%s256 + $0x3d8] sm:$0xff]
      %v415 = vld [vmem:[%s256 + $0x3e0] sm:$0xff]
      %v416 = vld [vmem:[%s256 + $0x3e8] sm:$0xff]
      %v417 = vld [vmem:[%s256 + $0x3f0] sm:$0xff]
      %v418 = vld [vmem:[%s256 + $0x3f8] sm:$0xff]
      %v419 = vld [vmem:[%s256 + $0x400] sm:$0xff]
      %v420 = vld [vmem:[%s256 + $0x408] sm:$0xff]
      %v421 = vld [vmem:[%s256 + $0x410] sm:$0xff]
      %v422 = vld [vmem:[%s256 + $0x418] sm:$0xff]
      %v423 = vld [vmem:[%s256 + $0x420] sm:$0xff]
      %v424 = vld [vmem:[%s256 + $0x428] sm:$0xff]
      %v425 = vld [vmem:[%s256 + $0x430] sm:$0xff]
      %v426 = vld [vmem:[%s256 + $0x438] sm:$0xff]
      %v427 = vld [vmem:[%s256 + $0x440] sm:$0xff]
      %v428 = vld [vmem:[%s256 + $0x448] sm:$0xff]
      %v429 = vld [vmem:[%s256 + $0x450] sm:$0xff]
      %v430 = vld [vmem:[%s256 + $0x458] sm:$0xff]
      %v431 = vld [vmem:[%s256 + $0x460] sm:$0xff]
      %v432 = vld [vmem:[%s256 + $0x468] sm:$0xff]
      %v433 = vld [vmem:[%s256 + $0x470] sm:$0xff]
      %v434 = vld [vmem:[%s256 + $0x478] sm:$0xff]
      %v435 = vld [vmem:[%s256 + $0x480] sm:$0xff]
      %v436 = vld [vmem:[%s256 + $0x488] sm:$0xff]
      %v437 = vld [vmem:[%s256 + $0x490] sm:$0xff]
      %v438 = vld [vmem:[%s256 + $0x498] sm:$0xff]
      %v439 = vld [vmem:[%s256 + $0x4a0] sm:$0xff]
      %v440 = vld [vmem:[%s256 + $0x4a8] sm:$0xff]
      %v441 = vld [vmem:[%s256 + $0x4b0] sm:$0xff]
      %v442 = vld [vmem:[%s256 + $0x4b8] sm:$0xff]
      %v443 = vld [vmem:[%s256 + $0x4c0] sm:$0xff]
      %v444 = vld [vmem:[%s256 + $0x4c8] sm:$0xff]
      %v447 = vlaneseq
      %v448 = vshrl.u32 %v447, 7
      %v449 = vsub.s32 0, %v448
      %v450 = vrot.slane %v288, %v449
      %v451 = vlaneseq
      %v452 = vshrl.u32 %v451, 7
      %v453 = vsub.s32 1, %v452
      %v454 = vrot.slane %v288, %v453
      %v455 = vlaneseq
      %v456 = vshrl.u32 %v455, 7
      %v457 = vsub.s32 2, %v456
      %v458 = vrot.slane %v288, %v457
      %v459 = vlaneseq
      %v460 = vshrl.u32 %v459, 7
      %v461 = vsub.s32 3, %v460
      %v462 = vrot.slane %v288, %v461
      %v463 = vlaneseq
      %v464 = vshrl.u32 %v463, 7
      %v465 = vsub.s32 4, %v464
      %v466 = vrot.slane %v288, %v465
      %v467 = vlaneseq
      %v468 = vshrl.u32 %v467, 7
      %v469 = vsub.s32 5, %v468
      %v470 = vrot.slane %v288, %v469
      %v471 = vlaneseq
      %v472 = vshrl.u32 %v471, 7
      %v473 = vsub.s32 6, %v472
      %v474 = vrot.slane %v288, %v473
      %v475 = vlaneseq
      %v476 = vshrl.u32 %v475, 7
      %v477 = vsub.s32 7, %v476
      %v478 = vrot.slane %v288, %v477
      %v479 = vlaneseq
      %v480 = vshrl.u32 %v479, 7
      %v481 = vsub.s32 0, %v480
      %v482 = vrot.slane %v290, %v481
      %v483 = vlaneseq
      %v484 = vshrl.u32 %v483, 7
      %v485 = vsub.s32 1, %v484
      %v486 = vrot.slane %v290, %v485
      %v487 = vlaneseq
      %v488 = vshrl.u32 %v487, 7
      %v489 = vsub.s32 2, %v488
      %v490 = vrot.slane %v290, %v489
      %v502 = vmul.f32 %v291, %v450
      %v503 = vmul.f32 %v292, %v454
      %v504 = vmul.f32 %v293, %v458
      %v505 = vmul.f32 %v294, %v462
      %v506 = vmul.f32 %v295, %v466
      %v507 = vmul.f32 %v296, %v470
      %v508 = vmul.f32 %v297, %v474
      %v509 = vmul.f32 %v298, %v478
      %v510 = vmul.f32 %v299, %v482
      %v511 = vmul.f32 %v300, %v486
      %v512 = vmul.f32 %v301, %v490
      %v513 = vmul.f32 %v302, %v450
      %v514 = vmul.f32 %v303, %v454
      %v515 = vmul.f32 %v304, %v458
      %v516 = vmul.f32 %v305, %v462
      %v517 = vmul.f32 %v306, %v466
      %v518 = vmul.f32 %v307, %v470
      %v519 = vmul.f32 %v308, %v474
      %v520 = vmul.f32 %v309, %v478
      %v521 = vmul.f32 %v310, %v482
      %v522 = vmul.f32 %v311, %v486
      %v523 = vmul.f32 %v312, %v490
      %v524 = vmul.f32 %v313, %v450
      %v525 = vmul.f32 %v314, %v454
      %v526 = vmul.f32 %v315, %v458
      %v527 = vmul.f32 %v316, %v462
      %v528 = vmul.f32 %v317, %v466
      %v529 = vmul.f32 %v318, %v470
      %v530 = vmul.f32 %v319, %v474
      %v531 = vmul.f32 %v320, %v478
      %v532 = vmul.f32 %v321, %v482
      %v533 = vmul.f32 %v322, %v486
      %v534 = vmul.f32 %v323, %v490
      %v535 = vmul.f32 %v324, %v450
      %v536 = vmul.f32 %v325, %v454
      %v537 = vmul.f32 %v326, %v458
      %v538 = vmul.f32 %v327, %v462
      %v539 = vmul.f32 %v328, %v466
      %v540 = vmul.f32 %v329, %v470
      %v541 = vmul.f32 %v330, %v474
      %v542 = vmul.f32 %v331, %v478
      %v543 = vmul.f32 %v332, %v482
      %v544 = vmul.f32 %v333, %v486
      %v545 = vmul.f32 %v334, %v490
      %v546 = vmul.f32 %v335, %v450
      %v547 = vmul.f32 %v336, %v454
      %v548 = vmul.f32 %v337, %v458
      %v549 = vmul.f32 %v338, %v462
      %v550 = vmul.f32 %v339, %v466
      %v551 = vmul.f32 %v340, %v470
      %v552 = vmul.f32 %v341, %v474
      %v553 = vmul.f32 %v342, %v478
      %v554 = vmul.f32 %v343, %v482
      %v555 = vmul.f32 %v344, %v486
      %v556 = vmul.f32 %v345, %v490
      %v557 = vmul.f32 %v346, %v450
      %v558 = vmul.f32 %v347, %v454
      %v559 = vmul.f32 %v348, %v458
      %v560 = vmul.f32 %v349, %v462
      %v561 = vmul.f32 %v350, %v466
      %v562 = vmul.f32 %v351, %v470
      %v563 = vmul.f32 %v352, %v474
      %v564 = vmul.f32 %v353, %v478
      %v565 = vmul.f32 %v354, %v482
      %v566 = vmul.f32 %v355, %v486
      %v567 = vmul.f32 %v356, %v490
      %v568 = vmul.f32 %v357, %v450
      %v569 = vmul.f32 %v358, %v454
      %v570 = vmul.f32 %v359, %v458
      %v571 = vmul.f32 %v360, %v462
      %v572 = vmul.f32 %v361, %v466
      %v573 = vmul.f32 %v362, %v470
      %v574 = vmul.f32 %v363, %v474
      %v575 = vmul.f32 %v364, %v478
      %v576 = vmul.f32 %v365, %v482
      %v577 = vmul.f32 %v366, %v486
      %v578 = vmul.f32 %v367, %v490
      %v579 = vmul.f32 %v368, %v450
      %v580 = vmul.f32 %v369, %v454
      %v581 = vmul.f32 %v370, %v458
      %v582 = vmul.f32 %v371, %v462
      %v583 = vmul.f32 %v372, %v466
      %v584 = vmul.f32 %v373, %v470
      %v585 = vmul.f32 %v374, %v474
      %v586 = vmul.f32 %v375, %v478
      %v587 = vmul.f32 %v376, %v482
      %v588 = vmul.f32 %v377, %v486
      %v589 = vmul.f32 %v378, %v490
      %v590 = vmul.f32 %v379, %v450
      %v591 = vmul.f32 %v380, %v454
      %v592 = vmul.f32 %v381, %v458
      %v593 = vmul.f32 %v382, %v462
      %v594 = vmul.f32 %v383, %v466
      %v595 = vmul.f32 %v384, %v470
      %v596 = vmul.f32 %v385, %v474
      %v597 = vmul.f32 %v386, %v478
      %v598 = vmul.f32 %v387, %v482
      %v599 = vmul.f32 %v388, %v486
      %v600 = vmul.f32 %v389, %v490
      %v601 = vmul.f32 %v390, %v450
      %v602 = vmul.f32 %v391, %v454
      %v603 = vmul.f32 %v392, %v458
      %v604 = vmul.f32 %v393, %v462
      %v605 = vmul.f32 %v394, %v466
      %v606 = vmul.f32 %v395, %v470
      %v607 = vmul.f32 %v396, %v474
      %v608 = vmul.f32 %v397, %v478
      %v609 = vmul.f32 %v398, %v482
      %v610 = vmul.f32 %v399, %v486
      %v611 = vmul.f32 %v400, %v490
      %v612 = vmul.f32 %v401, %v450
      %v613 = vmul.f32 %v402, %v454
      %v614 = vmul.f32 %v403, %v458
      %v615 = vmul.f32 %v404, %v462
      %v616 = vmul.f32 %v405, %v466
      %v617 = vmul.f32 %v406, %v470
      %v618 = vmul.f32 %v407, %v474
      %v619 = vmul.f32 %v408, %v478
      %v620 = vmul.f32 %v409, %v482
      %v621 = vmul.f32 %v410, %v486
      %v622 = vmul.f32 %v411, %v490
      %v623 = vmul.f32 %v412, %v450
      %v624 = vmul.f32 %v413, %v454
      %v625 = vmul.f32 %v414, %v458
      %v626 = vmul.f32 %v415, %v462
      %v627 = vmul.f32 %v416, %v466
      %v628 = vmul.f32 %v417, %v470
      %v629 = vmul.f32 %v418, %v474
      %v630 = vmul.f32 %v419, %v478
      %v631 = vmul.f32 %v420, %v482
      %v632 = vmul.f32 %v421, %v486
      %v633 = vmul.f32 %v422, %v490
      %v634 = vmul.f32 %v423, %v450
      %v635 = vmul.f32 %v424, %v454
      %v636 = vmul.f32 %v425, %v458
      %v637 = vmul.f32 %v426, %v462
      %v638 = vmul.f32 %v427, %v466
      %v639 = vmul.f32 %v428, %v470
      %v640 = vmul.f32 %v429, %v474
      %v641 = vmul.f32 %v430, %v478
      %v642 = vmul.f32 %v431, %v482
      %v643 = vmul.f32 %v432, %v486
      %v644 = vmul.f32 %v433, %v490
      %v645 = vmul.f32 %v434, %v450
      %v646 = vmul.f32 %v435, %v454
      %v647 = vmul.f32 %v436, %v458
      %v648 = vmul.f32 %v437, %v462
      %v649 = vmul.f32 %v438, %v466
      %v650 = vmul.f32 %v439, %v470
      %v651 = vmul.f32 %v440, %v474
      %v652 = vmul.f32 %v441, %v478
      %v653 = vmul.f32 %v442, %v482
      %v654 = vmul.f32 %v443, %v486
      %v655 = vmul.f32 %v444, %v490
      %v656 = vld [vmem:[%s2] sm:$0xff]
      %v657 = vld [vmem:[%s2 + $0x8] sm:$0xff]
      %v658 = vld [vmem:[%s2 + $0x10] sm:$0xff]
      %v659 = vld [vmem:[%s2 + $0x18] sm:$0xff]
      %v660 = vld [vmem:[%s2 + $0x20] sm:$0xff]
      %v661 = vld [vmem:[%s2 + $0x28] sm:$0xff]
      %v662 = vld [vmem:[%s2 + $0x30] sm:$0xff]
      %v663 = vld [vmem:[%s2 + $0x38] sm:$0xff]
      %v664 = vld [vmem:[%s2 + $0x40] sm:$0xff]
      %v665 = vld [vmem:[%s2 + $0x48] sm:$0xff]
      %v666 = vld [vmem:[%s2 + $0x50] sm:$0xff]
      %v667 = vld [vmem:[%s2 + $0x58] sm:$0xff]
      %v668 = vld [vmem:[%s2 + $0x60] sm:$0xff]
      %v669 = vld [vmem:[%s2 + $0x68] sm:$0xff]
      %v670 = vld [vmem:[%s2 + $0x70] sm:$0xff]
      %v671 = vld [vmem:[%s2 + $0x78] sm:$0xff]
      %v672 = vld [vmem:[%s2 + $0x80] sm:$0xff]
      %v673 = vld [vmem:[%s2 + $0x88] sm:$0xff]
      %v674 = vld [vmem:[%s2 + $0x90] sm:$0xff]
      %v675 = vld [vmem:[%s2 + $0x98] sm:$0xff]
      %v676 = vld [vmem:[%s2 + $0xa0] sm:$0xff]
      %v677 = vld [vmem:[%s2 + $0xa8] sm:$0xff]
      %v678 = vld [vmem:[%s2 + $0xb0] sm:$0xff]
      %v679 = vld [vmem:[%s2 + $0xb8] sm:$0xff]
      %v680 = vld [vmem:[%s2 + $0xc0] sm:$0xff]
      %v681 = vld [vmem:[%s2 + $0xc8] sm:$0xff]
      %v682 = vld [vmem:[%s2 + $0xd0] sm:$0xff]
      %v683 = vld [vmem:[%s2 + $0xd8] sm:$0xff]
      %v684 = vld [vmem:[%s2 + $0xe0] sm:$0xff]
      %v685 = vld [vmem:[%s2 + $0xe8] sm:$0xff]
      %v686 = vld [vmem:[%s2 + $0xf0] sm:$0xff]
      %v687 = vld [vmem:[%s2 + $0xf8] sm:$0xff]
      %v688 = vld [vmem:[%s2 + $0x100] sm:$0xff]
      %v689 = vld [vmem:[%s2 + $0x108] sm:$0xff]
      %v690 = vld [vmem:[%s2 + $0x110] sm:$0xff]
      %v691 = vld [vmem:[%s2 + $0x118] sm:$0xff]
      %v692 = vld [vmem:[%s2 + $0x120] sm:$0xff]
      %v693 = vld [vmem:[%s2 + $0x128] sm:$0xff]
      %v694 = vld [vmem:[%s2 + $0x130] sm:$0xff]
      %v695 = vld [vmem:[%s2 + $0x138] sm:$0xff]
      %v696 = vld [vmem:[%s2 + $0x140] sm:$0xff]
      %v697 = vld [vmem:[%s2 + $0x148] sm:$0xff]
      %v698 = vld [vmem:[%s2 + $0x150] sm:$0xff]
      %v699 = vld [vmem:[%s2 + $0x158] sm:$0xff]
      %v700 = vld [vmem:[%s2 + $0x160] sm:$0xff]
      %v701 = vld [vmem:[%s2 + $0x168] sm:$0xff]
      %v702 = vld [vmem:[%s2 + $0x170] sm:$0xff]
      %v703 = vld [vmem:[%s2 + $0x178] sm:$0xff]
      %v704 = vld [vmem:[%s2 + $0x180] sm:$0xff]
      %v705 = vld [vmem:[%s2 + $0x188] sm:$0xff]
      %v706 = vld [vmem:[%s2 + $0x190] sm:$0xff]
      %v707 = vld [vmem:[%s2 + $0x198] sm:$0xff]
      %v708 = vld [vmem:[%s2 + $0x1a0] sm:$0xff]
      %v709 = vld [vmem:[%s2 + $0x1a8] sm:$0xff]
      %v710 = vld [vmem:[%s2 + $0x1b0] sm:$0xff]
      %v711 = vld [vmem:[%s2 + $0x1b8] sm:$0xff]
      %v712 = vld [vmem:[%s2 + $0x1c0] sm:$0xff]
      %v713 = vld [vmem:[%s2 + $0x1c8] sm:$0xff]
      %v714 = vld [vmem:[%s2 + $0x1d0] sm:$0xff]
      %v715 = vld [vmem:[%s2 + $0x1d8] sm:$0xff]
      %v716 = vld [vmem:[%s2 + $0x1e0] sm:$0xff]
      %v717 = vld [vmem:[%s2 + $0x1e8] sm:$0xff]
      %v718 = vld [vmem:[%s2 + $0x1f0] sm:$0xff]
      %v719 = vld [vmem:[%s2 + $0x1f8] sm:$0xff]
      %v720 = vld [vmem:[%s2 + $0x200] sm:$0xff]
      %v721 = vld [vmem:[%s2 + $0x208] sm:$0xff]
      %v722 = vld [vmem:[%s2 + $0x210] sm:$0xff]
      %v723 = vld [vmem:[%s2 + $0x218] sm:$0xff]
      %v724 = vld [vmem:[%s2 + $0x220] sm:$0xff]
      %v725 = vld [vmem:[%s2 + $0x228] sm:$0xff]
      %v726 = vld [vmem:[%s2 + $0x230] sm:$0xff]
      %v727 = vld [vmem:[%s2 + $0x238] sm:$0xff]
      %v728 = vld [vmem:[%s2 + $0x240] sm:$0xff]
      %v729 = vld [vmem:[%s2 + $0x248] sm:$0xff]
      %v730 = vld [vmem:[%s2 + $0x250] sm:$0xff]
      %v731 = vld [vmem:[%s2 + $0x258] sm:$0xff]
      %v732 = vld [vmem:[%s2 + $0x260] sm:$0xff]
      %v733 = vld [vmem:[%s2 + $0x268] sm:$0xff]
      %v734 = vld [vmem:[%s2 + $0x270] sm:$0xff]
      %v735 = vld [vmem:[%s2 + $0x278] sm:$0xff]
      %v736 = vld [vmem:[%s2 + $0x280] sm:$0xff]
      %v737 = vld [vmem:[%s2 + $0x288] sm:$0xff]
      %v738 = vld [vmem:[%s2 + $0x290] sm:$0xff]
      %v739 = vld [vmem:[%s2 + $0x298] sm:$0xff]
      %v740 = vld [vmem:[%s2 + $0x2a0] sm:$0xff]
      %v741 = vld [vmem:[%s2 + $0x2a8] sm:$0xff]
      %v742 = vld [vmem:[%s2 + $0x2b0] sm:$0xff]
      %v743 = vld [vmem:[%s2 + $0x2b8] sm:$0xff]
      %v744 = vld [vmem:[%s2 + $0x2c0] sm:$0xff]
      %v745 = vld [vmem:[%s2 + $0x2c8] sm:$0xff]
      %v746 = vld [vmem:[%s2 + $0x2d0] sm:$0xff]
      %v747 = vld [vmem:[%s2 + $0x2d8] sm:$0xff]
      %v748 = vld [vmem:[%s2 + $0x2e0] sm:$0xff]
      %v749 = vld [vmem:[%s2 + $0x2e8] sm:$0xff]
      %v750 = vld [vmem:[%s2 + $0x2f0] sm:$0xff]
      %v751 = vld [vmem:[%s2 + $0x2f8] sm:$0xff]
      %v752 = vld [vmem:[%s2 + $0x300] sm:$0xff]
      %v753 = vld [vmem:[%s2 + $0x308] sm:$0xff]
      %v754 = vld [vmem:[%s2 + $0x310] sm:$0xff]
      %v755 = vld [vmem:[%s2 + $0x318] sm:$0xff]
      %v756 = vld [vmem:[%s2 + $0x320] sm:$0xff]
      %v757 = vld [vmem:[%s2 + $0x328] sm:$0xff]
      %v758 = vld [vmem:[%s2 + $0x330] sm:$0xff]
      %v759 = vld [vmem:[%s2 + $0x338] sm:$0xff]
      %v760 = vld [vmem:[%s2 + $0x340] sm:$0xff]
      %v761 = vld [vmem:[%s2 + $0x348] sm:$0xff]
      %v762 = vld [vmem:[%s2 + $0x350] sm:$0xff]
      %v763 = vld [vmem:[%s2 + $0x358] sm:$0xff]
      %v764 = vld [vmem:[%s2 + $0x360] sm:$0xff]
      %v765 = vld [vmem:[%s2 + $0x368] sm:$0xff]
      %v766 = vld [vmem:[%s2 + $0x370] sm:$0xff]
      %v767 = vld [vmem:[%s2 + $0x378] sm:$0xff]
      %v768 = vld [vmem:[%s2 + $0x380] sm:$0xff]
      %v769 = vld [vmem:[%s2 + $0x388] sm:$0xff]
      %v770 = vld [vmem:[%s2 + $0x390] sm:$0xff]
      %v771 = vld [vmem:[%s2 + $0x398] sm:$0xff]
      %v772 = vld [vmem:[%s2 + $0x3a0] sm:$0xff]
      %v773 = vld [vmem:[%s2 + $0x3a8] sm:$0xff]
      %v774 = vld [vmem:[%s2 + $0x3b0] sm:$0xff]
      %v775 = vld [vmem:[%s2 + $0x3b8] sm:$0xff]
      %v776 = vld [vmem:[%s2 + $0x3c0] sm:$0xff]
      %v777 = vld [vmem:[%s2 + $0x3c8] sm:$0xff]
      %v778 = vld [vmem:[%s2 + $0x3d0] sm:$0xff]
      %v779 = vld [vmem:[%s2 + $0x3d8] sm:$0xff]
      %v780 = vld [vmem:[%s2 + $0x3e0] sm:$0xff]
      %v781 = vld [vmem:[%s2 + $0x3e8] sm:$0xff]
      %v782 = vld [vmem:[%s2 + $0x3f0] sm:$0xff]
      %v783 = vld [vmem:[%s2 + $0x3f8] sm:$0xff]
      %v784 = vld [vmem:[%s2 + $0x400] sm:$0xff]
      %v785 = vld [vmem:[%s2 + $0x408] sm:$0xff]
      %v786 = vld [vmem:[%s2 + $0x410] sm:$0xff]
      %v787 = vld [vmem:[%s2 + $0x418] sm:$0xff]
      %v788 = vld [vmem:[%s2 + $0x420] sm:$0xff]
      %v789 = vld [vmem:[%s2 + $0x428] sm:$0xff]
      %v790 = vld [vmem:[%s2 + $0x430] sm:$0xff]
      %v791 = vld [vmem:[%s2 + $0x438] sm:$0xff]
      %v792 = vld [vmem:[%s2 + $0x440] sm:$0xff]
      %v793 = vld [vmem:[%s2 + $0x448] sm:$0xff]
      %v794 = vld [vmem:[%s2 + $0x450] sm:$0xff]
      %v795 = vld [vmem:[%s2 + $0x458] sm:$0xff]
      %v796 = vld [vmem:[%s2 + $0x460] sm:$0xff]
      %v797 = vld [vmem:[%s2 + $0x468] sm:$0xff]
      %v798 = vld [vmem:[%s2 + $0x470] sm:$0xff]
      %v799 = vld [vmem:[%s2 + $0x478] sm:$0xff]
      %v800 = vld [vmem:[%s2 + $0x480] sm:$0xff]
      %v801 = vld [vmem:[%s2 + $0x488] sm:$0xff]
      %v802 = vld [vmem:[%s2 + $0x490] sm:$0xff]
      %v803 = vld [vmem:[%s2 + $0x498] sm:$0xff]
      %v804 = vld [vmem:[%s2 + $0x4a0] sm:$0xff]
      %v805 = vld [vmem:[%s2 + $0x4a8] sm:$0xff]
      %v806 = vld [vmem:[%s2 + $0x4b0] sm:$0xff]
      %v807 = vld [vmem:[%s2 + $0x4b8] sm:$0xff]
      %v808 = vld [vmem:[%s2 + $0x4c0] sm:$0xff]
      %v809 = vld [vmem:[%s2 + $0x4c8] sm:$0xff]
      %v810 = vld [vmem:[%s2 + $0x4d0] sm:$0xff]
      %v811 = vld [vmem:[%s2 + $0x4d8] sm:$0xff]
      %v812 = vld [vmem:[%s2 + $0x4e0] sm:$0xff]
      %v813 = vld [vmem:[%s2 + $0x4e8] sm:$0xff]
      %v814 = vld [vmem:[%s2 + $0x4f0] sm:$0xff]
      %v815 = vld [vmem:[%s2 + $0x4f8] sm:$0xff]
      %v816 = vld [vmem:[%s2 + $0x500] sm:$0xff]
      %v817 = vld [vmem:[%s2 + $0x508] sm:$0xff]
      %v818 = vld [vmem:[%s2 + $0x510] sm:$0xff]
      %v819 = vld [vmem:[%s2 + $0x518] sm:$0xff]
      %v820 = vld [vmem:[%s2 + $0x520] sm:$0xff]
      %v821 = vld [vmem:[%s2 + $0x528] sm:$0xff]
      %v822 = vld [vmem:[%s2 + $0x530] sm:$0xff]
      %v823 = vld [vmem:[%s2 + $0x538] sm:$0xff]
      %v824 = vld [vmem:[%s2 + $0x540] sm:$0xff]
      %v825 = vld [vmem:[%s2 + $0x548] sm:$0xff]
      %v826 = vld [vmem:[%s2 + $0x550] sm:$0xff]
      %v827 = vld [vmem:[%s2 + $0x558] sm:$0xff]
      %v828 = vld [vmem:[%s2 + $0x560] sm:$0xff]
      %v829 = vld [vmem:[%s2 + $0x568] sm:$0xff]
      %v830 = vld [vmem:[%s2 + $0x570] sm:$0xff]
      %v831 = vld [vmem:[%s2 + $0x578] sm:$0xff]
      %v832 = vld [vmem:[%s2 + $0x580] sm:$0xff]
      %v833 = vld [vmem:[%s2 + $0x588] sm:$0xff]
      %v834 = vld [vmem:[%s2 + $0x590] sm:$0xff]
      %v835 = vld [vmem:[%s2 + $0x598] sm:$0xff]
      %v836 = vld [vmem:[%s2 + $0x5a0] sm:$0xff]
      %v837 = vld [vmem:[%s2 + $0x5a8] sm:$0xff]
      %v838 = vld [vmem:[%s2 + $0x5b0] sm:$0xff]
      %v839 = vld [vmem:[%s2 + $0x5b8] sm:$0xff]
      %v840 = vld [vmem:[%s2 + $0x5c0] sm:$0xff]
      %v841 = vld [vmem:[%s2 + $0x5c8] sm:$0xff]
      %v842 = vld [vmem:[%s2 + $0x5d0] sm:$0xff]
      %v843 = vld [vmem:[%s2 + $0x5d8] sm:$0xff]
      %v844 = vld [vmem:[%s2 + $0x5e0] sm:$0xff]
      %v845 = vld [vmem:[%s2 + $0x5e8] sm:$0xff]
      %v846 = vld [vmem:[%s2 + $0x5f0] sm:$0xff]
      %v847 = vld [vmem:[%s2 + $0x5f8] sm:$0xff]
      %v848 = vld [vmem:[%s2 + $0x600] sm:$0xff]
      %v849 = vld [vmem:[%s2 + $0x608] sm:$0xff]
      %v850 = vld [vmem:[%s2 + $0x610] sm:$0xff]
      %v851 = vld [vmem:[%s2 + $0x618] sm:$0xff]
      %v852 = vld [vmem:[%s2 + $0x620] sm:$0xff]
      %v853 = vld [vmem:[%s2 + $0x628] sm:$0xff]
      %v854 = vld [vmem:[%s2 + $0x630] sm:$0xff]
      %v855 = vld [vmem:[%s2 + $0x638] sm:$0xff]
      %v856 = vld [vmem:[%s2 + $0x640] sm:$0xff]
      %v857 = vld [vmem:[%s2 + $0x648] sm:$0xff]
      %v858 = vld [vmem:[%s2 + $0x650] sm:$0xff]
      %v859 = vld [vmem:[%s2 + $0x658] sm:$0xff]
      %v860 = vld [vmem:[%s2 + $0x660] sm:$0xff]
      %v861 = vld [vmem:[%s2 + $0x668] sm:$0xff]
      %v862 = vld [vmem:[%s2 + $0x670] sm:$0xff]
      %v863 = vld [vmem:[%s2 + $0x678] sm:$0xff]
      %v864 = vld [vmem:[%s2 + $0x680] sm:$0xff]
      %v865 = vld [vmem:[%s2 + $0x688] sm:$0xff]
      %v866 = vld [vmem:[%s2 + $0x690] sm:$0xff]
      %v867 = vld [vmem:[%s2 + $0x698] sm:$0xff]
      %v868 = vld [vmem:[%s2 + $0x6a0] sm:$0xff]
      %v869 = vld [vmem:[%s2 + $0x6a8] sm:$0xff]
      %v870 = vld [vmem:[%s2 + $0x6b0] sm:$0xff]
      %v871 = vld [vmem:[%s2 + $0x6b8] sm:$0xff]
      %v872 = vld [vmem:[%s2 + $0x6c0] sm:$0xff]
      %v873 = vld [vmem:[%s2 + $0x6c8] sm:$0xff]
      %v874 = vld [vmem:[%s2 + $0x6d0] sm:$0xff]
      %v875 = vld [vmem:[%s2 + $0x6d8] sm:$0xff]
      %v876 = vld [vmem:[%s2 + $0x6e0] sm:$0xff]
      %v877 = vld [vmem:[%s2 + $0x6e8] sm:$0xff]
      %v878 = vld [vmem:[%s2 + $0x6f0] sm:$0xff]
      %v879 = vld [vmem:[%s2 + $0x6f8] sm:$0xff]
      %v880 = vld [vmem:[%s2 + $0x700] sm:$0xff]
      %v881 = vld [vmem:[%s2 + $0x708] sm:$0xff]
      %v882 = vld [vmem:[%s2 + $0x710] sm:$0xff]
      %v883 = vld [vmem:[%s2 + $0x718] sm:$0xff]
      %v884 = vld [vmem:[%s2 + $0x720] sm:$0xff]
      %v885 = vld [vmem:[%s2 + $0x728] sm:$0xff]
      %v886 = vld [vmem:[%s2 + $0x730] sm:$0xff]
      %v887 = vld [vmem:[%s2 + $0x738] sm:$0xff]
      %v888 = vld [vmem:[%s2 + $0x740] sm:$0xff]
      %v889 = vld [vmem:[%s2 + $0x748] sm:$0xff]
      %v890 = vld [vmem:[%s2 + $0x750] sm:$0xff]
      %v891 = vld [vmem:[%s2 + $0x758] sm:$0xff]
      %v892 = vld [vmem:[%s2 + $0x760] sm:$0xff]
      %v893 = vld [vmem:[%s2 + $0x768] sm:$0xff]
      %v894 = vld [vmem:[%s2 + $0x770] sm:$0xff]
      %v895 = vld [vmem:[%s2 + $0x778] sm:$0xff]
      %v896 = vld [vmem:[%s2 + $0x780] sm:$0xff]
      %v897 = vld [vmem:[%s2 + $0x788] sm:$0xff]
      %v898 = vld [vmem:[%s2 + $0x790] sm:$0xff]
      %v899 = vld [vmem:[%s2 + $0x798] sm:$0xff]
      %v900 = vld [vmem:[%s2 + $0x7a0] sm:$0xff]
      %v901 = vld [vmem:[%s2 + $0x7a8] sm:$0xff]
      %v902 = vld [vmem:[%s2 + $0x7b0] sm:$0xff]
      %v903 = vld [vmem:[%s2 + $0x7b8] sm:$0xff]
      %v904 = vld [vmem:[%s2 + $0x7c0] sm:$0xff]
      %v905 = vld [vmem:[%s2 + $0x7c8] sm:$0xff]
      %v906 = vld [vmem:[%s2 + $0x7d0] sm:$0xff]
      %v907 = vld [vmem:[%s2 + $0x7d8] sm:$0xff]
      %v908 = vld [vmem:[%s2 + $0x7e0] sm:$0xff]
      %v909 = vld [vmem:[%s2 + $0x7e8] sm:$0xff]
      %v910 = vld [vmem:[%s2 + $0x7f0] sm:$0xff]
      %v911 = vld [vmem:[%s2 + $0x7f8] sm:$0xff]
      %v912 = vld [vmem:[%s2 + $0x800] sm:$0xff]
      %v913 = vld [vmem:[%s2 + $0x808] sm:$0xff]
      %v914 = vld [vmem:[%s2 + $0x810] sm:$0xff]
      %v915 = vld [vmem:[%s2 + $0x818] sm:$0xff]
      %v916 = vld [vmem:[%s2 + $0x820] sm:$0xff]
      %v917 = vld [vmem:[%s2 + $0x828] sm:$0xff]
      %v918 = vld [vmem:[%s2 + $0x830] sm:$0xff]
      %v919 = vld [vmem:[%s2 + $0x838] sm:$0xff]
      %v920 = vld [vmem:[%s2 + $0x840] sm:$0xff]
      %v921 = vld [vmem:[%s2 + $0x848] sm:$0xff]
      %v922 = vld [vmem:[%s2 + $0x850] sm:$0xff]
      %v923 = vld [vmem:[%s2 + $0x858] sm:$0xff]
      %v924 = vld [vmem:[%s2 + $0x860] sm:$0xff]
      %v925 = vld [vmem:[%s2 + $0x868] sm:$0xff]
      %v926 = vld [vmem:[%s2 + $0x870] sm:$0xff]
      %v927 = vld [vmem:[%s2 + $0x878] sm:$0xff]
      %v928 = vld [vmem:[%s2 + $0x880] sm:$0xff]
      %v929 = vld [vmem:[%s2 + $0x888] sm:$0xff]
      %v930 = vld [vmem:[%s2 + $0x890] sm:$0xff]
      %v931 = vld [vmem:[%s2 + $0x898] sm:$0xff]
      %v932 = vld [vmem:[%s2 + $0x8a0] sm:$0xff]
      %v933 = vld [vmem:[%s2 + $0x8a8] sm:$0xff]
      %v934 = vld [vmem:[%s2 + $0x8b0] sm:$0xff]
      %v935 = vld [vmem:[%s2 + $0x8b8] sm:$0xff]
      %v936 = vld [vmem:[%s2 + $0x8c0] sm:$0xff]
      %v937 = vld [vmem:[%s2 + $0x8c8] sm:$0xff]
      %v938 = vld [vmem:[%s2 + $0x8d0] sm:$0xff]
      %v939 = vld [vmem:[%s2 + $0x8d8] sm:$0xff]
      %v940 = vld [vmem:[%s2 + $0x8e0] sm:$0xff]
      %v941 = vld [vmem:[%s2 + $0x8e8] sm:$0xff]
      %v942 = vld [vmem:[%s2 + $0x8f0] sm:$0xff]
      %v943 = vld [vmem:[%s2 + $0x8f8] sm:$0xff]
      %v944 = vld [vmem:[%s2 + $0x900] sm:$0xff]
      %v945 = vld [vmem:[%s2 + $0x908] sm:$0xff]
      %v946 = vld [vmem:[%s2 + $0x910] sm:$0xff]
      %v947 = vld [vmem:[%s2 + $0x918] sm:$0xff]
      %v948 = vld [vmem:[%s2 + $0x920] sm:$0xff]
      %v949 = vld [vmem:[%s2 + $0x928] sm:$0xff]
      %v950 = vld [vmem:[%s2 + $0x930] sm:$0xff]
      %v951 = vld [vmem:[%s2 + $0x938] sm:$0xff]
      %v952 = vld [vmem:[%s2 + $0x940] sm:$0xff]
      %v953 = vld [vmem:[%s2 + $0x948] sm:$0xff]
      %v954 = vld [vmem:[%s2 + $0x950] sm:$0xff]
      %v955 = vld [vmem:[%s2 + $0x958] sm:$0xff]
      %v956 = vld [vmem:[%s2 + $0x960] sm:$0xff]
      %v957 = vld [vmem:[%s2 + $0x968] sm:$0xff]
      %v958 = vld [vmem:[%s2 + $0x970] sm:$0xff]
      %v959 = vld [vmem:[%s2 + $0x978] sm:$0xff]
      %v960 = vld [vmem:[%s2 + $0x980] sm:$0xff]
      %v961 = vld [vmem:[%s2 + $0x988] sm:$0xff]
      %v962 = vld [vmem:[%s2 + $0x990] sm:$0xff]
      %v963 = vld [vmem:[%s2 + $0x998] sm:$0xff]
      %v964 = vld [vmem:[%s2 + $0x9a0] sm:$0xff]
      %v965 = vld [vmem:[%s2 + $0x9a8] sm:$0xff]
      %v966 = vld [vmem:[%s2 + $0x9b0] sm:$0xff]
      %v967 = vld [vmem:[%s2 + $0x9b8] sm:$0xff]
      %v968 = vld [vmem:[%s2 + $0x9c0] sm:$0xff]
      %v969 = vld [vmem:[%s2 + $0x9c8] sm:$0xff]
      %v970 = vld [vmem:[%s2 + $0x9d0] sm:$0xff]
      %v971 = vld [vmem:[%s2 + $0x9d8] sm:$0xff]
      %v972 = vld [vmem:[%s2 + $0x9e0] sm:$0xff]
      %v973 = vld [vmem:[%s2 + $0x9e8] sm:$0xff]
      %v974 = vld [vmem:[%s2 + $0x9f0] sm:$0xff]
      %v975 = vld [vmem:[%s2 + $0x9f8] sm:$0xff]
      %v976 = vld [vmem:[%s2 + $0xa00] sm:$0xff]
      %v977 = vld [vmem:[%s2 + $0xa08] sm:$0xff]
      %v978 = vld [vmem:[%s2 + $0xa10] sm:$0xff]
      %v979 = vld [vmem:[%s2 + $0xa18] sm:$0xff]
      %v980 = vld [vmem:[%s2 + $0xa20] sm:$0xff]
      %v981 = vld [vmem:[%s2 + $0xa28] sm:$0xff]
      %v982 = vld [vmem:[%s2 + $0xa30] sm:$0xff]
      %v983 = vld [vmem:[%s2 + $0xa38] sm:$0xff]
      %v984 = vld [vmem:[%s2 + $0xa40] sm:$0xff]
      %v985 = vld [vmem:[%s2 + $0xa48] sm:$0xff]
      %v986 = vld [vmem:[%s2 + $0xa50] sm:$0xff]
      %v987 = vld [vmem:[%s2 + $0xa58] sm:$0xff]
      %v988 = vld [vmem:[%s2 + $0xa60] sm:$0xff]
      %v989 = vld [vmem:[%s2 + $0xa68] sm:$0xff]
      %v990 = vld [vmem:[%s2 + $0xa70] sm:$0xff]
      %v991 = vld [vmem:[%s2 + $0xa78] sm:$0xff]
      %vm992 = vcmask 523264
      %v994 = vsel %vm992, %v512, 0
      %v997 = vsel %vm992, %v523, 0
      %v1000 = vsel %vm992, %v534, 0
      %v1003 = vsel %vm992, %v545, 0
      %v1006 = vsel %vm992, %v556, 0
      %v1009 = vsel %vm992, %v567, 0
      %v1012 = vsel %vm992, %v578, 0
      %v1015 = vsel %vm992, %v589, 0
      %v1018 = vsel %vm992, %v600, 0
      %v1021 = vsel %vm992, %v611, 0
      %v1024 = vsel %vm992, %v622, 0
      %v1027 = vsel %vm992, %v633, 0
      %v1030 = vsel %vm992, %v644, 0
      %v1033 = vsel %vm992, %v655, 0
      %1035 = vmatprep.subr.mxu0 %v657
      %1036 = vmatpush1.msra.mxu0 %v656
      %1037 = vmatprep.subr.mxu0 %v659
      %1038 = vmatpush1.msra.mxu0 %v658
      %1039 = vmatprep.subr.mxu0 %v661
      %1040 = vmatpush1.msra.mxu0 %v660
      %1041 = vmatprep.subr.mxu0 %v663
      %1042 = vmatpush1.msra.mxu0 %v662
      %1043 = vmatprep.subr.mxu0 %v665
      %1044 = vmatpush1.msra.mxu0 %v664
      %1045 = vmatprep.subr.mxu0 %v667
      %1046 = vmatpush1.msra.mxu0 %v666
      %1047 = vmatprep.subr.mxu0 %v669
      %1048 = vmatpush1.msra.mxu0 %v668
      %1049 = vmatprep.subr.mxu0 %v671
      %1050 = vmatpush1.msra.mxu0 %v670
      %1051 = vmatprep.subr.mxu0 %v673
      %1052 = vmatpush1.msra.mxu0 %v672
      %1053 = vmatprep.subr.mxu0 %v675
      %1054 = vmatpush1.msra.mxu0 %v674
      %1055 = vmatprep.subr.mxu0 %v677
      %1056 = vmatpush1.msra.mxu0 %v676
      %1057 = vmatprep.subr.mxu0 %v679
      %1058 = vmatpush1.msra.mxu0 %v678
      %1059 = vmatprep.subr.mxu0 %v681
      %1060 = vmatpush1.msra.mxu0 %v680
      %1061 = vmatprep.subr.mxu0 %v683
      %1062 = vmatpush1.msra.mxu0 %v682
      %1063 = vmatprep.subr.mxu0 %v685
      %1064 = vmatpush1.msra.mxu0 %v684
      %1065 = vmatprep.subr.mxu0 %v687
      %1066 = vmatpush1.msra.mxu0 %v686
      %1067 = vmatprep.subr.mxu0 %v689
      %1068 = vmatpush1.msra.mxu0 %v688
      %1069 = vmatprep.subr.mxu0 %v691
      %1070 = vmatpush1.msra.mxu0 %v690
      %1071 = vmatprep.subr.mxu0 %v693
      %1072 = vmatpush1.msra.mxu0 %v692
      %1073 = vmatprep.subr.mxu0 %v695
      %1074 = vmatpush1.msra.mxu0 %v694
      %1075 = vmatprep.subr.mxu0 %v697
      %1076 = vmatpush1.msra.mxu0 %v696
      %1077 = vmatprep.subr.mxu0 %v699
      %1078 = vmatpush1.msra.mxu0 %v698
      %1079 = vmatprep.subr.mxu0 %v701
      %1080 = vmatpush1.msra.mxu0 %v700
      %1081 = vmatprep.subr.mxu0 %v703
      %1082 = vmatpush1.msra.mxu0 %v702
      %1083 = vmatprep.subr.mxu0 %v705
      %1084 = vmatpush1.msra.mxu0 %v704
      %1085 = vmatprep.subr.mxu0 %v707
      %1086 = vmatpush1.msra.mxu0 %v706
      %1087 = vmatprep.subr.mxu0 %v709
      %1088 = vmatpush1.msra.mxu0 %v708
      %1089 = vmatprep.subr.mxu0 %v711
      %1090 = vmatpush1.msra.mxu0 %v710
      %1091 = vmatprep.subr.mxu0 %v713
      %1092 = vmatpush1.msra.mxu0 %v712
      %1093 = vmatprep.subr.mxu0 %v715
      %1094 = vmatpush1.msra.mxu0 %v714
      %1095 = vmatprep.subr.mxu0 %v717
      %1096 = vmatpush1.msra.mxu0 %v716
      %1097 = vmatprep.subr.mxu0 %v719
      %1098 = vmatpush1.msra.mxu0 %v718
      %1099 = vmatprep.mubr.f32.mxu0 %v503
      %1100 = vmatmul.mubr.f32.gmra.mrb[0].mxu0 %v502
      %v1101 = vpop.f32.mrb[0].mxu0
      %v1102 = vadd.f32 0.0, %v1101
      %v1103 = vpop.f32.mrb[0].mxu0
      %v1104 = vadd.f32 0.0, %v1103
      %1105 = vmatprep.mubr.f32.mxu0 %v514
      %1106 = vmatmul.mubr.f32.gmra.mrb[0].mxu0 %v513
      %v1107 = vpop.f32.mrb[0].mxu0
      %v1108 = vadd.f32 0.0, %v1107
      %v1109 = vpop.f32.mrb[0].mxu0
      %v1110 = vadd.f32 0.0, %v1109
      %1111 = vmatprep.mubr.f32.mxu0 %v525
      %1112 = vmatmul.mubr.f32.gmra.mrb[0].mxu0 %v524
      %v1113 = vpop.f32.mrb[0].mxu0
      %v1114 = vadd.f32 0.0, %v1113
      %v1115 = vpop.f32.mrb[0].mxu0
      %v1116 = vadd.f32 0.0, %v1115
      %1117 = vmatprep.mubr.f32.mxu0 %v536
      %1118 = vmatmul.mubr.f32.gmra.mrb[0].mxu0 %v535
      %v1119 = vpop.f32.mrb[0].mxu0
      %v1120 = vadd.f32 0.0, %v1119
      %v1121 = vpop.f32.mrb[0].mxu0
      %v1122 = vadd.f32 0.0, %v1121
      %1123 = vmatprep.mubr.f32.mxu0 %v547
      %1124 = vmatmul.mubr.f32.gmra.mrb[0].mxu0 %v546
      %v1125 = vpop.f32.mrb[0].mxu0
      %v1126 = vadd.f32 0.0, %v1125
      %v1127 = vpop.f32.mrb[0].mxu0
      %v1128 = vadd.f32 0.0, %v1127
      %1129 = vmatprep.mubr.f32.mxu0 %v558
      %1130 = vmatmul.mubr.f32.gmra.mrb[0].mxu0 %v557
      %v1131 = vpop.f32.mrb[0].mxu0
      %v1132 = vadd.f32 0.0, %v1131
      %v1133 = vpop.f32.mrb[0].mxu0
      %v1134 = vadd.f32 0.0, %v1133
      %1135 = vmatprep.mubr.f32.mxu0 %v569
      %1136 = vmatmul.mubr.f32.gmra.mrb[0].mxu0 %v568
      %v1137 = vpop.f32.mrb[0].mxu0
      %v1138 = vadd.f32 0.0, %v1137
      %v1139 = vpop.f32.mrb[0].mxu0
      %v1140 = vadd.f32 0.0, %v1139
      %1141 = vmatprep.mubr.f32.mxu0 %v580
      %1142 = vmatmul.mubr.f32.gmra.mrb[0].mxu0 %v579
      %v1143 = vpop.f32.mrb[0].mxu0
      %v1144 = vadd.f32 0.0, %v1143
      %v1145 = vpop.f32.mrb[0].mxu0
      %v1146 = vadd.f32 0.0, %v1145
      %1147 = vmatprep.mubr.f32.mxu0 %v591
      %1148 = vmatmul.mubr.f32.gmra.mrb[0].mxu0 %v590
      %v1149 = vpop.f32.mrb[0].mxu0
      %v1150 = vadd.f32 0.0, %v1149
      %v1151 = vpop.f32.mrb[0].mxu0
      %v1152 = vadd.f32 0.0, %v1151
      %1153 = vmatprep.mubr.f32.mxu0 %v602
      %1154 = vmatmul.mubr.f32.gmra.mrb[0].mxu0 %v601
      %v1155 = vpop.f32.mrb[0].mxu0
      %v1156 = vadd.f32 0.0, %v1155
      %v1157 = vpop.f32.mrb[0].mxu0
      %v1158 = vadd.f32 0.0, %v1157
      %1159 = vmatprep.mubr.f32.mxu0 %v613
      %1160 = vmatmul.mubr.f32.gmra.mrb[0].mxu0 %v612
      %v1161 = vpop.f32.mrb[0].mxu0
      %v1162 = vadd.f32 0.0, %v1161
      %v1163 = vpop.f32.mrb[0].mxu0
      %v1164 = vadd.f32 0.0, %v1163
      %1165 = vmatprep.mubr.f32.mxu0 %v624
      %1166 = vmatmul.mubr.f32.gmra.mrb[0].mxu0 %v623
      %v1167 = vpop.f32.mrb[0].mxu0
      %v1168 = vadd.f32 0.0, %v1167
      %v1169 = vpop.f32.mrb[0].mxu0
      %v1170 = vadd.f32 0.0, %v1169
      %1171 = vmatprep.mubr.f32.mxu0 %v635
      %1172 = vmatmul.mubr.f32.gmra.mrb[0].mxu0 %v634
      %v1173 = vpop.f32.mrb[0].mxu0
      %v1174 = vadd.f32 0.0, %v1173
      %v1175 = vpop.f32.mrb[0].mxu0
      %v1176 = vadd.f32 0.0, %v1175
      %1177 = vmatprep.mubr.f32.mxu0 %v646
      %1178 = vmatmul.mubr.f32.gmra.mrb[0].mxu0 %v645
      %v1179 = vpop.f32.mrb[0].mxu0
      %v1180 = vadd.f32 0.0, %v1179
      %v1181 = vpop.f32.mrb[0].mxu0
      %v1182 = vadd.f32 0.0, %v1181
      %1183 = vdwg.mxu0
      %1184 = vmatprep.subr.mxu0 %v721
      %1185 = vmatpush1.msra.mxu0 %v720
      %1186 = vmatprep.subr.mxu0 %v723
      %1187 = vmatpush1.msra.mxu0 %v722
      %1188 = vmatprep.subr.mxu0 %v725
      %1189 = vmatpush1.msra.mxu0 %v724
      %1190 = vmatprep.subr.mxu0 %v727
      %1191 = vmatpush1.msra.mxu0 %v726
      %1192 = vmatprep.subr.mxu0 %v729
      %1193 = vmatpush1.msra.mxu0 %v728
      %1194 = vmatprep.subr.mxu0 %v731
      %1195 = vmatpush1.msra.mxu0 %v730
      %1196 = vmatprep.subr.mxu0 %v733
      %1197 = vmatpush1.msra.mxu0 %v732
      %1198 = vmatprep.subr.mxu0 %v735
      %1199 = vmatpush1.msra.mxu0 %v734
      %1200 = vmatprep.subr.mxu0 %v737
      %1201 = vmatpush1.msra.mxu0 %v736
      %1202 = vmatprep.subr.mxu0 %v739
      %1203 = vmatpush1.msra.mxu0 %v738
      %1204 = vmatprep.subr.mxu0 %v741
      %1205 = vmatpush1.msra.mxu0 %v740
      %1206 = vmatprep.subr.mxu0 %v743
      %1207 = vmatpush1.msra.mxu0 %v742
      %1208 = vmatprep.subr.mxu0 %v745
      %1209 = vmatpush1.msra.mxu0 %v744
      %1210 = vmatprep.subr.mxu0 %v747
      %1211 = vmatpush1.msra.mxu0 %v746
      %1212 = vmatprep.subr.mxu0 %v749
      %1213 = vmatpush1.msra.mxu0 %v748
      %1214 = vmatprep.subr.mxu0 %v751
      %1215 = vmatpush1.msra.mxu0 %v750
      %1216 = vmatprep.subr.mxu0 %v753
      %1217 = vmatpush1.msra.mxu0 %v752
      %1218 = vmatprep.subr.mxu0 %v755
      %1219 = vmatpush1.msra.mxu0 %v754
      %1220 = vmatprep.subr.mxu0 %v757
      %1221 = vmatpush1.msra.mxu0 %v756
      %1222 = vmatprep.subr.mxu0 %v759
      %1223 = vmatpush1.msra.mxu0 %v758
      %1224 = vmatprep.subr.mxu0 %v761
      %1225 = vmatpush1.msra.mxu0 %v760
      %1226 = vmatprep.subr.mxu0 %v763
      %1227 = vmatpush1.msra.mxu0 %v762
      %1228 = vmatprep.subr.mxu0 %v765
      %1229 = vmatpush1.msra.mxu0 %v764
      %1230 = vmatprep.subr.mxu0 %v767
      %1231 = vmatpush1.msra.mxu0 %v766
      %1232 = vmatprep.subr.mxu0 %v769
      %1233 = vmatpush1.msra.mxu0 %v768
      %1234 = vmatprep.subr.mxu0 %v771
      %1235 = vmatpush1.msra.mxu0 %v770
      %1236 = vmatprep.subr.mxu0 %v773
      %1237 = vmatpush1.msra.mxu0 %v772
      %1238 = vmatprep.subr.mxu0 %v775
      %1239 = vmatpush1.msra.mxu0 %v774
      %1240 = vmatprep.subr.mxu0 %v777
      %1241 = vmatpush1.msra.mxu0 %v776
      %1242 = vmatprep.subr.mxu0 %v779
      %1243 = vmatpush1.msra.mxu0 %v778
      %1244 = vmatprep.subr.mxu0 %v781
      %1245 = vmatpush1.msra.mxu0 %v780
      %1246 = vmatprep.subr.mxu0 %v783
      %1247 = vmatpush1.msra.mxu0 %v782
      %1248 = vmatprep.mubr.f32.mxu0 %v505
      %1249 = vmatmul.mubr.f32.gmra.mrb[0].mxu0 %v504
      %v1250 = vpop.f32.mrb[0].mxu0
      %v1251 = vadd.f32 %v1102, %v1250
      %v1252 = vpop.f32.mrb[0].mxu0
      %v1253 = vadd.f32 %v1104, %v1252
      %1254 = vmatprep.mubr.f32.mxu0 %v516
      %1255 = vmatmul.mubr.f32.gmra.mrb[0].mxu0 %v515
      %v1256 = vpop.f32.mrb[0].mxu0
      %v1257 = vadd.f32 %v1108, %v1256
      %v1258 = vpop.f32.mrb[0].mxu0
      %v1259 = vadd.f32 %v1110, %v1258
      %1260 = vmatprep.mubr.f32.mxu0 %v527
      %1261 = vmatmul.mubr.f32.gmra.mrb[0].mxu0 %v526
      %v1262 = vpop.f32.mrb[0].mxu0
      %v1263 = vadd.f32 %v1114, %v1262
      %v1264 = vpop.f32.mrb[0].mxu0
      %v1265 = vadd.f32 %v1116, %v1264
      %1266 = vmatprep.mubr.f32.mxu0 %v538
      %1267 = vmatmul.mubr.f32.gmra.mrb[0].mxu0 %v537
      %v1268 = vpop.f32.mrb[0].mxu0
      %v1269 = vadd.f32 %v1120, %v1268
      %v1270 = vpop.f32.mrb[0].mxu0
      %v1271 = vadd.f32 %v1122, %v1270
      %1272 = vmatprep.mubr.f32.mxu0 %v549
      %1273 = vmatmul.mubr.f32.gmra.mrb[0].mxu0 %v548
      %v1274 = vpop.f32.mrb[0].mxu0
      %v1275 = vadd.f32 %v1126, %v1274
      %v1276 = vpop.f32.mrb[0].mxu0
      %v1277 = vadd.f32 %v1128, %v1276
      %1278 = vmatprep.mubr.f32.mxu0 %v560
      %1279 = vmatmul.mubr.f32.gmra.mrb[0].mxu0 %v559
      %v1280 = vpop.f32.mrb[0].mxu0
      %v1281 = vadd.f32 %v1132, %v1280
      %v1282 = vpop.f32.mrb[0].mxu0
      %v1283 = vadd.f32 %v1134, %v1282
      %1284 = vmatprep.mubr.f32.mxu0 %v571
      %1285 = vmatmul.mubr.f32.gmra.mrb[0].mxu0 %v570
      %v1286 = vpop.f32.mrb[0].mxu0
      %v1287 = vadd.f32 %v1138, %v1286
      %v1288 = vpop.f32.mrb[0].mxu0
      %v1289 = vadd.f32 %v1140, %v1288
      %1290 = vmatprep.mubr.f32.mxu0 %v582
      %1291 = vmatmul.mubr.f32.gmra.mrb[0].mxu0 %v581
      %v1292 = vpop.f32.mrb[0].mxu0
      %v1293 = vadd.f32 %v1144, %v1292
      %v1294 = vpop.f32.mrb[0].mxu0
      %v1295 = vadd.f32 %v1146, %v1294
      %1296 = vmatprep.mubr.f32.mxu0 %v593
      %1297 = vmatmul.mubr.f32.gmra.mrb[0].mxu0 %v592
      %v1298 = vpop.f32.mrb[0].mxu0
      %v1299 = vadd.f32 %v1150, %v1298
      %v1300 = vpop.f32.mrb[0].mxu0
      %v1301 = vadd.f32 %v1152, %v1300
      %1302 = vmatprep.mubr.f32.mxu0 %v604
      %1303 = vmatmul.mubr.f32.gmra.mrb[0].mxu0 %v603
      %v1304 = vpop.f32.mrb[0].mxu0
      %v1305 = vadd.f32 %v1156, %v1304
      %v1306 = vpop.f32.mrb[0].mxu0
      %v1307 = vadd.f32 %v1158, %v1306
      %1308 = vmatprep.mubr.f32.mxu0 %v615
      %1309 = vmatmul.mubr.f32.gmra.mrb[0].mxu0 %v614
      %v1310 = vpop.f32.mrb[0].mxu0
      %v1311 = vadd.f32 %v1162, %v1310
      %v1312 = vpop.f32.mrb[0].mxu0
      %v1313 = vadd.f32 %v1164, %v1312
      %1314 = vmatprep.mubr.f32.mxu0 %v626
      %1315 = vmatmul.mubr.f32.gmra.mrb[0].mxu0 %v625
      %v1316 = vpop.f32.mrb[0].mxu0
      %v1317 = vadd.f32 %v1168, %v1316
      %v1318 = vpop.f32.mrb[0].mxu0
      %v1319 = vadd.f32 %v1170, %v1318
      %1320 = vmatprep.mubr.f32.mxu0 %v637
      %1321 = vmatmul.mubr.f32.gmra.mrb[0].mxu0 %v636
      %v1322 = vpop.f32.mrb[0].mxu0
      %v1323 = vadd.f32 %v1174, %v1322
      %v1324 = vpop.f32.mrb[0].mxu0
      %v1325 = vadd.f32 %v1176, %v1324
      %1326 = vmatprep.mubr.f32.mxu0 %v648
      %1327 = vmatmul.mubr.f32.gmra.mrb[0].mxu0 %v647
      %v1328 = vpop.f32.mrb[0].mxu0
      %v1329 = vadd.f32 %v1180, %v1328
      %v1330 = vpop.f32.mrb[0].mxu0
      %v1331 = vadd.f32 %v1182, %v1330
      %1332 = vdwg.mxu0
      %1333 = vmatprep.subr.mxu0 %v785
      %1334 = vmatpush1.msra.mxu0 %v784
      %1335 = vmatprep.subr.mxu0 %v787
      %1336 = vmatpush1.msra.mxu0 %v786
      %1337 = vmatprep.subr.mxu0 %v789
      %1338 = vmatpush1.msra.mxu0 %v788
      %1339 = vmatprep.subr.mxu0 %v791
      %1340 = vmatpush1.msra.mxu0 %v790
      %1341 = vmatprep.subr.mxu0 %v793
      %1342 = vmatpush1.msra.mxu0 %v792
      %1343 = vmatprep.subr.mxu0 %v795
      %1344 = vmatpush1.msra.mxu0 %v794
      %1345 = vmatprep.subr.mxu0 %v797
      %1346 = vmatpush1.msra.mxu0 %v796
      %1347 = vmatprep.subr.mxu0 %v799
      %1348 = vmatpush1.msra.mxu0 %v798
      %1349 = vmatprep.subr.mxu0 %v801
      %1350 = vmatpush1.msra.mxu0 %v800
      %1351 = vmatprep.subr.mxu0 %v803
      %1352 = vmatpush1.msra.mxu0 %v802
      %1353 = vmatprep.subr.mxu0 %v805
      %1354 = vmatpush1.msra.mxu0 %v804
      %1355 = vmatprep.subr.mxu0 %v807
      %1356 = vmatpush1.msra.mxu0 %v806
      %1357 = vmatprep.subr.mxu0 %v809
      %1358 = vmatpush1.msra.mxu0 %v808
      %1359 = vmatprep.subr.mxu0 %v811
      %1360 = vmatpush1.msra.mxu0 %v810
      %1361 = vmatprep.subr.mxu0 %v813
      %1362 = vmatpush1.msra.mxu0 %v812
      %1363 = vmatprep.subr.mxu0 %v815
      %1364 = vmatpush1.msra.mxu0 %v814
      %1365 = vmatprep.subr.mxu0 %v817
      %1366 = vmatpush1.msra.mxu0 %v816
      %1367 = vmatprep.subr.mxu0 %v819
      %1368 = vmatpush1.msra.mxu0 %v818
      %1369 = vmatprep.subr.mxu0 %v821
      %1370 = vmatpush1.msra.mxu0 %v820
      %1371 = vmatprep.subr.mxu0 %v823
      %1372 = vmatpush1.msra.mxu0 %v822
      %1373 = vmatprep.subr.mxu0 %v825
      %1374 = vmatpush1.msra.mxu0 %v824
      %1375 = vmatprep.subr.mxu0 %v827
      %1376 = vmatpush1.msra.mxu0 %v826
      %1377 = vmatprep.subr.mxu0 %v829
      %1378 = vmatpush1.msra.mxu0 %v828
      %1379 = vmatprep.subr.mxu0 %v831
      %1380 = vmatpush1.msra.mxu0 %v830
      %1381 = vmatprep.subr.mxu0 %v833
      %1382 = vmatpush1.msra.mxu0 %v832
      %1383 = vmatprep.subr.mxu0 %v835
      %1384 = vmatpush1.msra.mxu0 %v834
      %1385 = vmatprep.subr.mxu0 %v837
      %1386 = vmatpush1.msra.mxu0 %v836
      %1387 = vmatprep.subr.mxu0 %v839
      %1388 = vmatpush1.msra.mxu0 %v838
      %1389 = vmatprep.subr.mxu0 %v841
      %1390 = vmatpush1.msra.mxu0 %v840
      %1391 = vmatprep.subr.mxu0 %v843
      %1392 = vmatpush1.msra.mxu0 %v842
      %1393 = vmatprep.subr.mxu0 %v845
      %1394 = vmatpush1.msra.mxu0 %v844
      %1395 = vmatprep.subr.mxu0 %v847
      %1396 = vmatpush1.msra.mxu0 %v846
      %1397 = vmatprep.mubr.f32.mxu0 %v507
      %1398 = vmatmul.mubr.f32.gmra.mrb[0].mxu0 %v506
      %v1399 = vpop.f32.mrb[0].mxu0
      %v1400 = vadd.f32 %v1251, %v1399
      %v1401 = vpop.f32.mrb[0].mxu0
      %v1402 = vadd.f32 %v1253, %v1401
      %1403 = vmatprep.mubr.f32.mxu0 %v518
      %1404 = vmatmul.mubr.f32.gmra.mrb[0].mxu0 %v517
      %v1405 = vpop.f32.mrb[0].mxu0
      %v1406 = vadd.f32 %v1257, %v1405
      %v1407 = vpop.f32.mrb[0].mxu0
      %v1408 = vadd.f32 %v1259, %v1407
      %1409 = vmatprep.mubr.f32.mxu0 %v529
      %1410 = vmatmul.mubr.f32.gmra.mrb[0].mxu0 %v528
      %v1411 = vpop.f32.mrb[0].mxu0
      %v1412 = vadd.f32 %v1263, %v1411
      %v1413 = vpop.f32.mrb[0].mxu0
      %v1414 = vadd.f32 %v1265, %v1413
      %1415 = vmatprep.mubr.f32.mxu0 %v540
      %1416 = vmatmul.mubr.f32.gmra.mrb[0].mxu0 %v539
      %v1417 = vpop.f32.mrb[0].mxu0
      %v1418 = vadd.f32 %v1269, %v1417
      %v1419 = vpop.f32.mrb[0].mxu0
      %v1420 = vadd.f32 %v1271, %v1419
      %1421 = vmatprep.mubr.f32.mxu0 %v551
      %1422 = vmatmul.mubr.f32.gmra.mrb[0].mxu0 %v550
      %v1423 = vpop.f32.mrb[0].mxu0
      %v1424 = vadd.f32 %v1275, %v1423
      %v1425 = vpop.f32.mrb[0].mxu0
      %v1426 = vadd.f32 %v1277, %v1425
      %1427 = vmatprep.mubr.f32.mxu0 %v562
      %1428 = vmatmul.mubr.f32.gmra.mrb[0].mxu0 %v561
      %v1429 = vpop.f32.mrb[0].mxu0
      %v1430 = vadd.f32 %v1281, %v1429
      %v1431 = vpop.f32.mrb[0].mxu0
      %v1432 = vadd.f32 %v1283, %v1431
      %1433 = vmatprep.mubr.f32.mxu0 %v573
      %1434 = vmatmul.mubr.f32.gmra.mrb[0].mxu0 %v572
      %v1435 = vpop.f32.mrb[0].mxu0
      %v1436 = vadd.f32 %v1287, %v1435
      %v1437 = vpop.f32.mrb[0].mxu0
      %v1438 = vadd.f32 %v1289, %v1437
      %1439 = vmatprep.mubr.f32.mxu0 %v584
      %1440 = vmatmul.mubr.f32.gmra.mrb[0].mxu0 %v583
      %v1441 = vpop.f32.mrb[0].mxu0
      %v1442 = vadd.f32 %v1293, %v1441
      %v1443 = vpop.f32.mrb[0].mxu0
      %v1444 = vadd.f32 %v1295, %v1443
      %1445 = vmatprep.mubr.f32.mxu0 %v595
      %1446 = vmatmul.mubr.f32.gmra.mrb[0].mxu0 %v594
      %v1447 = vpop.f32.mrb[0].mxu0
      %v1448 = vadd.f32 %v1299, %v1447
      %v1449 = vpop.f32.mrb[0].mxu0
      %v1450 = vadd.f32 %v1301, %v1449
      %1451 = vmatprep.mubr.f32.mxu0 %v606
      %1452 = vmatmul.mubr.f32.gmra.mrb[0].mxu0 %v605
      %v1453 = vpop.f32.mrb[0].mxu0
      %v1454 = vadd.f32 %v1305, %v1453
      %v1455 = vpop.f32.mrb[0].mxu0
      %v1456 = vadd.f32 %v1307, %v1455
      %1457 = vmatprep.mubr.f32.mxu0 %v617
      %1458 = vmatmul.mubr.f32.gmra.mrb[0].mxu0 %v616
      %v1459 = vpop.f32.mrb[0].mxu0
      %v1460 = vadd.f32 %v1311, %v1459
      %v1461 = vpop.f32.mrb[0].mxu0
      %v1462 = vadd.f32 %v1313, %v1461
      %1463 = vmatprep.mubr.f32.mxu0 %v628
      %1464 = vmatmul.mubr.f32.gmra.mrb[0].mxu0 %v627
      %v1465 = vpop.f32.mrb[0].mxu0
      %v1466 = vadd.f32 %v1317, %v1465
      %v1467 = vpop.f32.mrb[0].mxu0
      %v1468 = vadd.f32 %v1319, %v1467
      %1469 = vmatprep.mubr.f32.mxu0 %v639
      %1470 = vmatmul.mubr.f32.gmra.mrb[0].mxu0 %v638
      %v1471 = vpop.f32.mrb[0].mxu0
      %v1472 = vadd.f32 %v1323, %v1471
      %v1473 = vpop.f32.mrb[0].mxu0
      %v1474 = vadd.f32 %v1325, %v1473
      %1475 = vmatprep.mubr.f32.mxu0 %v650
      %1476 = vmatmul.mubr.f32.gmra.mrb[0].mxu0 %v649
      %v1477 = vpop.f32.mrb[0].mxu0
      %v1478 = vadd.f32 %v1329, %v1477
      %v1479 = vpop.f32.mrb[0].mxu0
      %v1480 = vadd.f32 %v1331, %v1479
      %1481 = vdwg.mxu0
      %1482 = vmatprep.subr.mxu0 %v849
      %1483 = vmatpush1.msra.mxu0 %v848
      %1484 = vmatprep.subr.mxu0 %v851
      %1485 = vmatpush1.msra.mxu0 %v850
      %1486 = vmatprep.subr.mxu0 %v853
      %1487 = vmatpush1.msra.mxu0 %v852
      %1488 = vmatprep.subr.mxu0 %v855
      %1489 = vmatpush1.msra.mxu0 %v854
      %1490 = vmatprep.subr.mxu0 %v857
      %1491 = vmatpush1.msra.mxu0 %v856
      %1492 = vmatprep.subr.mxu0 %v859
      %1493 = vmatpush1.msra.mxu0 %v858
      %1494 = vmatprep.subr.mxu0 %v861
      %1495 = vmatpush1.msra.mxu0 %v860
      %1496 = vmatprep.subr.mxu0 %v863
      %1497 = vmatpush1.msra.mxu0 %v862
      %1498 = vmatprep.subr.mxu0 %v865
      %1499 = vmatpush1.msra.mxu0 %v864
      %1500 = vmatprep.subr.mxu0 %v867
      %1501 = vmatpush1.msra.mxu0 %v866
      %1502 = vmatprep.subr.mxu0 %v869
      %1503 = vmatpush1.msra.mxu0 %v868
      %1504 = vmatprep.subr.mxu0 %v871
      %1505 = vmatpush1.msra.mxu0 %v870
      %1506 = vmatprep.subr.mxu0 %v873
      %1507 = vmatpush1.msra.mxu0 %v872
      %1508 = vmatprep.subr.mxu0 %v875
      %1509 = vmatpush1.msra.mxu0 %v874
      %1510 = vmatprep.subr.mxu0 %v877
      %1511 = vmatpush1.msra.mxu0 %v876
      %1512 = vmatprep.subr.mxu0 %v879
      %1513 = vmatpush1.msra.mxu0 %v878
      %1514 = vmatprep.subr.mxu0 %v881
      %1515 = vmatpush1.msra.mxu0 %v880
      %1516 = vmatprep.subr.mxu0 %v883
      %1517 = vmatpush1.msra.mxu0 %v882
      %1518 = vmatprep.subr.mxu0 %v885
      %1519 = vmatpush1.msra.mxu0 %v884
      %1520 = vmatprep.subr.mxu0 %v887
      %1521 = vmatpush1.msra.mxu0 %v886
      %1522 = vmatprep.subr.mxu0 %v889
      %1523 = vmatpush1.msra.mxu0 %v888
      %1524 = vmatprep.subr.mxu0 %v891
      %1525 = vmatpush1.msra.mxu0 %v890
      %1526 = vmatprep.subr.mxu0 %v893
      %1527 = vmatpush1.msra.mxu0 %v892
      %1528 = vmatprep.subr.mxu0 %v895
      %1529 = vmatpush1.msra.mxu0 %v894
      %1530 = vmatprep.subr.mxu0 %v897
      %1531 = vmatpush1.msra.mxu0 %v896
      %1532 = vmatprep.subr.mxu0 %v899
      %1533 = vmatpush1.msra.mxu0 %v898
      %1534 = vmatprep.subr.mxu0 %v901
      %1535 = vmatpush1.msra.mxu0 %v900
      %1536 = vmatprep.subr.mxu0 %v903
      %1537 = vmatpush1.msra.mxu0 %v902
      %1538 = vmatprep.subr.mxu0 %v905
      %1539 = vmatpush1.msra.mxu0 %v904
      %1540 = vmatprep.subr.mxu0 %v907
      %1541 = vmatpush1.msra.mxu0 %v906
      %1542 = vmatprep.subr.mxu0 %v909
      %1543 = vmatpush1.msra.mxu0 %v908
      %1544 = vmatprep.subr.mxu0 %v911
      %1545 = vmatpush1.msra.mxu0 %v910
      %1546 = vmatprep.mubr.f32.mxu0 %v509
      %1547 = vmatmul.mubr.f32.gmra.mrb[0].mxu0 %v508
      %v1548 = vpop.f32.mrb[0].mxu0
      %v1549 = vadd.f32 %v1400, %v1548
      %v1550 = vpop.f32.mrb[0].mxu0
      %v1551 = vadd.f32 %v1402, %v1550
      %1552 = vmatprep.mubr.f32.mxu0 %v520
      %1553 = vmatmul.mubr.f32.gmra.mrb[0].mxu0 %v519
      %v1554 = vpop.f32.mrb[0].mxu0
      %v1555 = vadd.f32 %v1406, %v1554
      %v1556 = vpop.f32.mrb[0].mxu0
      %v1557 = vadd.f32 %v1408, %v1556
      %1558 = vmatprep.mubr.f32.mxu0 %v531
      %1559 = vmatmul.mubr.f32.gmra.mrb[0].mxu0 %v530
      %v1560 = vpop.f32.mrb[0].mxu0
      %v1561 = vadd.f32 %v1412, %v1560
      %v1562 = vpop.f32.mrb[0].mxu0
      %v1563 = vadd.f32 %v1414, %v1562
      %1564 = vmatprep.mubr.f32.mxu0 %v542
      %1565 = vmatmul.mubr.f32.gmra.mrb[0].mxu0 %v541
      %v1566 = vpop.f32.mrb[0].mxu0
      %v1567 = vadd.f32 %v1418, %v1566
      %v1568 = vpop.f32.mrb[0].mxu0
      %v1569 = vadd.f32 %v1420, %v1568
      %1570 = vmatprep.mubr.f32.mxu0 %v553
      %1571 = vmatmul.mubr.f32.gmra.mrb[0].mxu0 %v552
      %v1572 = vpop.f32.mrb[0].mxu0
      %v1573 = vadd.f32 %v1424, %v1572
      %v1574 = vpop.f32.mrb[0].mxu0
      %v1575 = vadd.f32 %v1426, %v1574
      %1576 = vmatprep.mubr.f32.mxu0 %v564
      %1577 = vmatmul.mubr.f32.gmra.mrb[0].mxu0 %v563
      %v1578 = vpop.f32.mrb[0].mxu0
      %v1579 = vadd.f32 %v1430, %v1578
      %v1580 = vpop.f32.mrb[0].mxu0
      %v1581 = vadd.f32 %v1432, %v1580
      %1582 = vmatprep.mubr.f32.mxu0 %v575
      %1583 = vmatmul.mubr.f32.gmra.mrb[0].mxu0 %v574
      %v1584 = vpop.f32.mrb[0].mxu0
      %v1585 = vadd.f32 %v1436, %v1584
      %v1586 = vpop.f32.mrb[0].mxu0
      %v1587 = vadd.f32 %v1438, %v1586
      %1588 = vmatprep.mubr.f32.mxu0 %v586
      %1589 = vmatmul.mubr.f32.gmra.mrb[0].mxu0 %v585
      %v1590 = vpop.f32.mrb[0].mxu0
      %v1591 = vadd.f32 %v1442, %v1590
      %v1592 = vpop.f32.mrb[0].mxu0
      %v1593 = vadd.f32 %v1444, %v1592
      %1594 = vmatprep.mubr.f32.mxu0 %v597
      %1595 = vmatmul.mubr.f32.gmra.mrb[0].mxu0 %v596
      %v1596 = vpop.f32.mrb[0].mxu0
      %v1597 = vadd.f32 %v1448, %v1596
      %v1598 = vpop.f32.mrb[0].mxu0
      %v1599 = vadd.f32 %v1450, %v1598
      %1600 = vmatprep.mubr.f32.mxu0 %v608
      %1601 = vmatmul.mubr.f32.gmra.mrb[0].mxu0 %v607
      %v1602 = vpop.f32.mrb[0].mxu0
      %v1603 = vadd.f32 %v1454, %v1602
      %v1604 = vpop.f32.mrb[0].mxu0
      %v1605 = vadd.f32 %v1456, %v1604
      %1606 = vmatprep.mubr.f32.mxu0 %v619
      %1607 = vmatmul.mubr.f32.gmra.mrb[0].mxu0 %v618
      %v1608 = vpop.f32.mrb[0].mxu0
      %v1609 = vadd.f32 %v1460, %v1608
      %v1610 = vpop.f32.mrb[0].mxu0
      %v1611 = vadd.f32 %v1462, %v1610
      %1612 = vmatprep.mubr.f32.mxu0 %v630
      %1613 = vmatmul.mubr.f32.gmra.mrb[0].mxu0 %v629
      %v1614 = vpop.f32.mrb[0].mxu0
      %v1615 = vadd.f32 %v1466, %v1614
      %v1616 = vpop.f32.mrb[0].mxu0
      %v1617 = vadd.f32 %v1468, %v1616
      %1618 = vmatprep.mubr.f32.mxu0 %v641
      %1619 = vmatmul.mubr.f32.gmra.mrb[0].mxu0 %v640
      %v1620 = vpop.f32.mrb[0].mxu0
      %v1621 = vadd.f32 %v1472, %v1620
      %v1622 = vpop.f32.mrb[0].mxu0
      %v1623 = vadd.f32 %v1474, %v1622
      %1624 = vmatprep.mubr.f32.mxu0 %v652
      %1625 = vmatmul.mubr.f32.gmra.mrb[0].mxu0 %v651
      %v1626 = vpop.f32.mrb[0].mxu0
      %v1627 = vadd.f32 %v1478, %v1626
      %v1628 = vpop.f32.mrb[0].mxu0
      %v1629 = vadd.f32 %v1480, %v1628
      %1630 = vdwg.mxu0
      %1631 = vmatprep.subr.mxu0 %v913
      %1632 = vmatpush1.msra.mxu0 %v912
      %1633 = vmatprep.subr.mxu0 %v915
      %1634 = vmatpush1.msra.mxu0 %v914
      %1635 = vmatprep.subr.mxu0 %v917
      %1636 = vmatpush1.msra.mxu0 %v916
      %1637 = vmatprep.subr.mxu0 %v919
      %1638 = vmatpush1.msra.mxu0 %v918
      %1639 = vmatprep.subr.mxu0 %v921
      %1640 = vmatpush1.msra.mxu0 %v920
      %1641 = vmatprep.subr.mxu0 %v923
      %1642 = vmatpush1.msra.mxu0 %v922
      %1643 = vmatprep.subr.mxu0 %v925
      %1644 = vmatpush1.msra.mxu0 %v924
      %1645 = vmatprep.subr.mxu0 %v927
      %1646 = vmatpush1.msra.mxu0 %v926
      %1647 = vmatprep.subr.mxu0 %v929
      %1648 = vmatpush1.msra.mxu0 %v928
      %1649 = vmatprep.subr.mxu0 %v931
      %1650 = vmatpush1.msra.mxu0 %v930
      %1651 = vmatprep.subr.mxu0 %v933
      %1652 = vmatpush1.msra.mxu0 %v932
      %1653 = vmatprep.subr.mxu0 %v935
      %1654 = vmatpush1.msra.mxu0 %v934
      %1655 = vmatprep.subr.mxu0 %v937
      %1656 = vmatpush1.msra.mxu0 %v936
      %1657 = vmatprep.subr.mxu0 %v939
      %1658 = vmatpush1.msra.mxu0 %v938
      %1659 = vmatprep.subr.mxu0 %v941
      %1660 = vmatpush1.msra.mxu0 %v940
      %1661 = vmatprep.subr.mxu0 %v943
      %1662 = vmatpush1.msra.mxu0 %v942
      %1663 = vmatprep.subr.mxu0 %v945
      %1664 = vmatpush1.msra.mxu0 %v944
      %1665 = vmatprep.subr.mxu0 %v947
      %1666 = vmatpush1.msra.mxu0 %v946
      %1667 = vmatprep.subr.mxu0 %v949
      %1668 = vmatpush1.msra.mxu0 %v948
      %1669 = vmatprep.subr.mxu0 %v951
      %1670 = vmatpush1.msra.mxu0 %v950
      %1671 = vmatprep.subr.mxu0 %v953
      %1672 = vmatpush1.msra.mxu0 %v952
      %1673 = vmatprep.subr.mxu0 %v955
      %1674 = vmatpush1.msra.mxu0 %v954
      %1675 = vmatprep.subr.mxu0 %v957
      %1676 = vmatpush1.msra.mxu0 %v956
      %1677 = vmatprep.subr.mxu0 %v959
      %1678 = vmatpush1.msra.mxu0 %v958
      %1679 = vmatprep.subr.mxu0 %v961
      %1680 = vmatpush1.msra.mxu0 %v960
      %1681 = vmatprep.subr.mxu0 %v963
      %1682 = vmatpush1.msra.mxu0 %v962
      %1683 = vmatprep.subr.mxu0 %v965
      %1684 = vmatpush1.msra.mxu0 %v964
      %1685 = vmatprep.subr.mxu0 %v967
      %1686 = vmatpush1.msra.mxu0 %v966
      %1687 = vmatprep.subr.mxu0 %v969
      %1688 = vmatpush1.msra.mxu0 %v968
      %1689 = vmatprep.subr.mxu0 %v971
      %1690 = vmatpush1.msra.mxu0 %v970
      %1691 = vmatprep.subr.mxu0 %v973
      %1692 = vmatpush1.msra.mxu0 %v972
      %1693 = vmatprep.subr.mxu0 %v975
      %1694 = vmatpush1.msra.mxu0 %v974
      %1695 = vmatprep.mubr.f32.mxu0 %v511
      %1696 = vmatmul.mubr.f32.gmra.mrb[0].mxu0 %v510
      %v1697 = vpop.f32.mrb[0].mxu0
      %v1698 = vadd.f32 %v1549, %v1697
      %v1699 = vpop.f32.mrb[0].mxu0
      %v1700 = vadd.f32 %v1551, %v1699
      %1701 = vmatprep.mubr.f32.mxu0 %v522
      %1702 = vmatmul.mubr.f32.gmra.mrb[0].mxu0 %v521
      %v1703 = vpop.f32.mrb[0].mxu0
      %v1704 = vadd.f32 %v1555, %v1703
      %v1705 = vpop.f32.mrb[0].mxu0
      %v1706 = vadd.f32 %v1557, %v1705
      %1707 = vmatprep.mubr.f32.mxu0 %v533
      %1708 = vmatmul.mubr.f32.gmra.mrb[0].mxu0 %v532
      %v1709 = vpop.f32.mrb[0].mxu0
      %v1710 = vadd.f32 %v1561, %v1709
      %v1711 = vpop.f32.mrb[0].mxu0
      %v1712 = vadd.f32 %v1563, %v1711
      %1713 = vmatprep.mubr.f32.mxu0 %v544
      %1714 = vmatmul.mubr.f32.gmra.mrb[0].mxu0 %v543
      %v1715 = vpop.f32.mrb[0].mxu0
      %v1716 = vadd.f32 %v1567, %v1715
      %v1717 = vpop.f32.mrb[0].mxu0
      %v1718 = vadd.f32 %v1569, %v1717
      %1719 = vmatprep.mubr.f32.mxu0 %v555
      %1720 = vmatmul.mubr.f32.gmra.mrb[0].mxu0 %v554
      %v1721 = vpop.f32.mrb[0].mxu0
      %v1722 = vadd.f32 %v1573, %v1721
      %v1723 = vpop.f32.mrb[0].mxu0
      %v1724 = vadd.f32 %v1575, %v1723
      %1725 = vmatprep.mubr.f32.mxu0 %v566
      %1726 = vmatmul.mubr.f32.gmra.mrb[0].mxu0 %v565
      %v1727 = vpop.f32.mrb[0].mxu0
      %v1728 = vadd.f32 %v1579, %v1727
      %v1729 = vpop.f32.mrb[0].mxu0
      %v1730 = vadd.f32 %v1581, %v1729
      %1731 = vmatprep.mubr.f32.mxu0 %v577
      %1732 = vmatmul.mubr.f32.gmra.mrb[0].mxu0 %v576
      %v1733 = vpop.f32.mrb[0].mxu0
      %v1734 = vadd.f32 %v1585, %v1733
      %v1735 = vpop.f32.mrb[0].mxu0
      %v1736 = vadd.f32 %v1587, %v1735
      %1737 = vmatprep.mubr.f32.mxu0 %v588
      %1738 = vmatmul.mubr.f32.gmra.mrb[0].mxu0 %v587
      %v1739 = vpop.f32.mrb[0].mxu0
      %v1740 = vadd.f32 %v1591, %v1739
      %v1741 = vpop.f32.mrb[0].mxu0
      %v1742 = vadd.f32 %v1593, %v1741
      %1743 = vmatprep.mubr.f32.mxu0 %v599
      %1744 = vmatmul.mubr.f32.gmra.mrb[0].mxu0 %v598
      %v1745 = vpop.f32.mrb[0].mxu0
      %v1746 = vadd.f32 %v1597, %v1745
      %v1747 = vpop.f32.mrb[0].mxu0
      %v1748 = vadd.f32 %v1599, %v1747
      %1749 = vmatprep.mubr.f32.mxu0 %v610
      %1750 = vmatmul.mubr.f32.gmra.mrb[0].mxu0 %v609
      %v1751 = vpop.f32.mrb[0].mxu0
      %v1752 = vadd.f32 %v1603, %v1751
      %v1753 = vpop.f32.mrb[0].mxu0
      %v1754 = vadd.f32 %v1605, %v1753
      %1755 = vmatprep.mubr.f32.mxu0 %v621
      %1756 = vmatmul.mubr.f32.gmra.mrb[0].mxu0 %v620
      %v1757 = vpop.f32.mrb[0].mxu0
      %v1758 = vadd.f32 %v1609, %v1757
      %v1759 = vpop.f32.mrb[0].mxu0
      %v1760 = vadd.f32 %v1611, %v1759
      %1761 = vmatprep.mubr.f32.mxu0 %v632
      %1762 = vmatmul.mubr.f32.gmra.mrb[0].mxu0 %v631
      %v1763 = vpop.f32.mrb[0].mxu0
      %v1764 = vadd.f32 %v1615, %v1763
      %v1765 = vpop.f32.mrb[0].mxu0
      %v1766 = vadd.f32 %v1617, %v1765
      %1767 = vmatprep.mubr.f32.mxu0 %v643
      %1768 = vmatmul.mubr.f32.gmra.mrb[0].mxu0 %v642
      %v1769 = vpop.f32.mrb[0].mxu0
      %v1770 = vadd.f32 %v1621, %v1769
      %v1771 = vpop.f32.mrb[0].mxu0
      %v1772 = vadd.f32 %v1623, %v1771
      %1773 = vmatprep.mubr.f32.mxu0 %v654
      %1774 = vmatmul.mubr.f32.gmra.mrb[0].mxu0 %v653
      %v1775 = vpop.f32.mrb[0].mxu0
      %v1776 = vadd.f32 %v1627, %v1775
      %v1777 = vpop.f32.mrb[0].mxu0
      %v1778 = vadd.f32 %v1629, %v1777
      %1779 = vdwg.mxu0
      %1780 = vmatprep.subr.mxu0 %v977
      %1781 = vmatpush1.msra.mxu0 %v976
      %1782 = vmatprep.subr.mxu0 %v979
      %1783 = vmatpush1.msra.mxu0 %v978
      %1784 = vmatprep.subr.mxu0 %v981
      %1785 = vmatpush1.msra.mxu0 %v980
      %1786 = vmatprep.subr.mxu0 %v983
      %1787 = vmatpush1.msra.mxu0 %v982
      %1788 = vmatprep.subr.mxu0 %v985
      %1789 = vmatpush1.msra.mxu0 %v984
      %1790 = vmatprep.subr.mxu0 %v987
      %1791 = vmatpush1.msra.mxu0 %v986
      %1792 = vmatprep.subr.mxu0 %v989
      %1793 = vmatpush1.msra.mxu0 %v988
      %1794 = vmatprep.subr.mxu0 %v991
      %1795 = vmatpush1.msra.mxu0 %v990
      %1796 = vmatprep.subr.mxu0 0.0
      %1797 = vmatpush1.msra.mxu0 0.0
      %1798 = vmatprep.subr.mxu0 0.0
      %1799 = vmatpush1.msra.mxu0 0.0
      %1800 = vmatprep.subr.mxu0 0.0
      %1801 = vmatpush1.msra.mxu0 0.0
      %1802 = vmatprep.subr.mxu0 0.0
      %1803 = vmatpush1.msra.mxu0 0.0
      %1804 = vmatprep.subr.mxu0 0.0
      %1805 = vmatpush1.msra.mxu0 0.0
      %1806 = vmatprep.subr.mxu0 0.0
      %1807 = vmatpush1.msra.mxu0 0.0
      %1808 = vmatprep.subr.mxu0 0.0
      %1809 = vmatpush1.msra.mxu0 0.0
      %1810 = vmatprep.subr.mxu0 0.0
      %1811 = vmatpush1.msra.mxu0 0.0
      %1812 = vmatprep.subr.mxu0 0.0
      %1813 = vmatpush1.msra.mxu0 0.0
      %1814 = vmatprep.subr.mxu0 0.0
      %1815 = vmatpush1.msra.mxu0 0.0
      %1816 = vmatprep.subr.mxu0 0.0
      %1817 = vmatpush1.msra.mxu0 0.0
      %1818 = vmatprep.subr.mxu0 0.0
      %1819 = vmatpush1.msra.mxu0 0.0
      %1820 = vmatprep.subr.mxu0 0.0
      %1821 = vmatpush1.msra.mxu0 0.0
      %1822 = vmatprep.subr.mxu0 0.0
      %1823 = vmatpush1.msra.mxu0 0.0
      %1824 = vmatprep.subr.mxu0 0.0
      %1825 = vmatpush1.msra.mxu0 0.0
      %1826 = vmatprep.subr.mxu0 0.0
      %1827 = vmatpush1.msra.mxu0 0.0
      %1828 = vmatprep.subr.mxu0 0.0
      %1829 = vmatpush1.msra.mxu0 0.0
      %1830 = vmatprep.subr.mxu0 0.0
      %1831 = vmatpush1.msra.mxu0 0.0
      %1832 = vmatprep.subr.mxu0 0.0
      %1833 = vmatpush1.msra.mxu0 0.0
      %1834 = vmatprep.subr.mxu0 0.0
      %1835 = vmatpush1.msra.mxu0 0.0
      %1836 = vmatprep.subr.mxu0 0.0
      %1837 = vmatpush1.msra.mxu0 0.0
      %1838 = vmatprep.subr.mxu0 0.0
      %1839 = vmatpush1.msra.mxu0 0.0
      %1840 = vmatprep.subr.mxu0 0.0
      %1841 = vmatpush1.msra.mxu0 0.0
      %1842 = vmatprep.subr.mxu0 0.0
      %1843 = vmatpush1.msra.mxu0 0.0
      %1844 = vmatprep.mubr.f32.mxu0 0.0
      %1845 = vmatmul.mubr.f32.gmra.mrb[0].mxu0 %v994
      %v1846 = vpop.f32.mrb[0].mxu0
      %v1847 = vadd.f32 %v1698, %v1846
      %v1848 = vpop.f32.mrb[0].mxu0
      %v1849 = vadd.f32 %v1700, %v1848
      %1850 = vmatprep.mubr.f32.mxu0 0.0
      %1851 = vmatmul.mubr.f32.gmra.mrb[0].mxu0 %v997
      %v1852 = vpop.f32.mrb[0].mxu0
      %v1853 = vadd.f32 %v1704, %v1852
      %v1854 = vpop.f32.mrb[0].mxu0
      %v1855 = vadd.f32 %v1706, %v1854
      %1856 = vmatprep.mubr.f32.mxu0 0.0
      %1857 = vmatmul.mubr.f32.gmra.mrb[0].mxu0 %v1000
      %v1858 = vpop.f32.mrb[0].mxu0
      %v1859 = vadd.f32 %v1710, %v1858
      %v1860 = vpop.f32.mrb[0].mxu0
      %v1861 = vadd.f32 %v1712, %v1860
      %1862 = vmatprep.mubr.f32.mxu0 0.0
      %1863 = vmatmul.mubr.f32.gmra.mrb[0].mxu0 %v1003
      %v1864 = vpop.f32.mrb[0].mxu0
      %v1865 = vadd.f32 %v1716, %v1864
      %v1866 = vpop.f32.mrb[0].mxu0
      %v1867 = vadd.f32 %v1718, %v1866
      %1868 = vmatprep.mubr.f32.mxu0 0.0
      %1869 = vmatmul.mubr.f32.gmra.mrb[0].mxu0 %v1006
      %v1870 = vpop.f32.mrb[0].mxu0
      %v1871 = vadd.f32 %v1722, %v1870
      %v1872 = vpop.f32.mrb[0].mxu0
      %v1873 = vadd.f32 %v1724, %v1872
      %1874 = vmatprep.mubr.f32.mxu0 0.0
      %1875 = vmatmul.mubr.f32.gmra.mrb[0].mxu0 %v1009
      %v1876 = vpop.f32.mrb[0].mxu0
      %v1877 = vadd.f32 %v1728, %v1876
      %v1878 = vpop.f32.mrb[0].mxu0
      %v1879 = vadd.f32 %v1730, %v1878
      %1880 = vmatprep.mubr.f32.mxu0 0.0
      %1881 = vmatmul.mubr.f32.gmra.mrb[0].mxu0 %v1012
      %v1882 = vpop.f32.mrb[0].mxu0
      %v1883 = vadd.f32 %v1734, %v1882
      %v1884 = vpop.f32.mrb[0].mxu0
      %v1885 = vadd.f32 %v1736, %v1884
      %1886 = vmatprep.mubr.f32.mxu0 0.0
      %1887 = vmatmul.mubr.f32.gmra.mrb[0].mxu0 %v1015
      %v1888 = vpop.f32.mrb[0].mxu0
      %v1889 = vadd.f32 %v1740, %v1888
      %v1890 = vpop.f32.mrb[0].mxu0
      %v1891 = vadd.f32 %v1742, %v1890
      %1892 = vmatprep.mubr.f32.mxu0 0.0
      %1893 = vmatmul.mubr.f32.gmra.mrb[0].mxu0 %v1018
      %v1894 = vpop.f32.mrb[0].mxu0
      %v1895 = vadd.f32 %v1746, %v1894
      %v1896 = vpop.f32.mrb[0].mxu0
      %v1897 = vadd.f32 %v1748, %v1896
      %1898 = vmatprep.mubr.f32.mxu0 0.0
      %1899 = vmatmul.mubr.f32.gmra.mrb[0].mxu0 %v1021
      %v1900 = vpop.f32.mrb[0].mxu0
      %v1901 = vadd.f32 %v1752, %v1900
      %v1902 = vpop.f32.mrb[0].mxu0
      %v1903 = vadd.f32 %v1754, %v1902
      %1904 = vmatprep.mubr.f32.mxu0 0.0
      %1905 = vmatmul.mubr.f32.gmra.mrb[0].mxu0 %v1024
      %v1906 = vpop.f32.mrb[0].mxu0
      %v1907 = vadd.f32 %v1758, %v1906
      %v1908 = vpop.f32.mrb[0].mxu0
      %v1909 = vadd.f32 %v1760, %v1908
      %1910 = vmatprep.mubr.f32.mxu0 0.0
      %1911 = vmatmul.mubr.f32.gmra.mrb[0].mxu0 %v1027
      %v1912 = vpop.f32.mrb[0].mxu0
      %v1913 = vadd.f32 %v1764, %v1912
      %v1914 = vpop.f32.mrb[0].mxu0
      %v1915 = vadd.f32 %v1766, %v1914
      %1916 = vmatprep.mubr.f32.mxu0 0.0
      %1917 = vmatmul.mubr.f32.gmra.mrb[0].mxu0 %v1030
      %v1918 = vpop.f32.mrb[0].mxu0
      %v1919 = vadd.f32 %v1770, %v1918
      %v1920 = vpop.f32.mrb[0].mxu0
      %v1921 = vadd.f32 %v1772, %v1920
      %1922 = vmatprep.mubr.f32.mxu0 0.0
      %1923 = vmatmul.mubr.f32.gmra.mrb[0].mxu0 %v1033
      %v1924 = vpop.f32.mrb[0].mxu0
      %v1925 = vadd.f32 %v1776, %v1924
      %v1926 = vpop.f32.mrb[0].mxu0
      %v1927 = vadd.f32 %v1778, %v1926
      %1928 = vdwg.mxu0
      %vm1929 = vcmask 556032
      %v1930 = vsel %vm1929, %v1849, 0.0
      %v1931 = vadd.f32 %v1847, %v1930
      %1932 = vadd.xlane.f32.xlu0 %v1931
      %v1933 = vpop.xlane.xlu0 %1932
      %v1934 = vsel %vm1929, %v1855, 0.0
      %v1935 = vadd.f32 %v1853, %v1934
      %1936 = vadd.xlane.f32.xlu0 %v1935
      %v1937 = vpop.xlane.xlu0 %1936
      %v1938 = vsel %vm1929, %v1861, 0.0
      %v1939 = vadd.f32 %v1859, %v1938
      %1940 = vadd.xlane.f32.xlu0 %v1939
      %v1941 = vpop.xlane.xlu0 %1940
      %v1942 = vsel %vm1929, %v1867, 0.0
      %v1943 = vadd.f32 %v1865, %v1942
      %1944 = vadd.xlane.f32.xlu0 %v1943
      %v1945 = vpop.xlane.xlu0 %1944
      %v1946 = vsel %vm1929, %v1873, 0.0
      %v1947 = vadd.f32 %v1871, %v1946
      %1948 = vadd.xlane.f32.xlu0 %v1947
      %v1949 = vpop.xlane.xlu0 %1948
      %v1950 = vsel %vm1929, %v1879, 0.0
      %v1951 = vadd.f32 %v1877, %v1950
      %1952 = vadd.xlane.f32.xlu0 %v1951
      %v1953 = vpop.xlane.xlu0 %1952
      %v1954 = vsel %vm1929, %v1885, 0.0
      %v1955 = vadd.f32 %v1883, %v1954
      %1956 = vadd.xlane.f32.xlu0 %v1955
      %v1957 = vpop.xlane.xlu0 %1956
      %v1958 = vsel %vm1929, %v1891, 0.0
      %v1959 = vadd.f32 %v1889, %v1958
      %1960 = vadd.xlane.f32.xlu0 %v1959
      %v1961 = vpop.xlane.xlu0 %1960
      %v1962 = vsel %vm1929, %v1897, 0.0
      %v1963 = vadd.f32 %v1895, %v1962
      %1964 = vadd.xlane.f32.xlu0 %v1963
      %v1965 = vpop.xlane.xlu0 %1964
      %v1966 = vsel %vm1929, %v1903, 0.0
      %v1967 = vadd.f32 %v1901, %v1966
      %1968 = vadd.xlane.f32.xlu0 %v1967
      %v1969 = vpop.xlane.xlu0 %1968
      %v1970 = vsel %vm1929, %v1909, 0.0
      %v1971 = vadd.f32 %v1907, %v1970
      %1972 = vadd.xlane.f32.xlu0 %v1971
      %v1973 = vpop.xlane.xlu0 %1972
      %v1974 = vsel %vm1929, %v1915, 0.0
      %v1975 = vadd.f32 %v1913, %v1974
      %1976 = vadd.xlane.f32.xlu0 %v1975
      %v1977 = vpop.xlane.xlu0 %1976
      %v1978 = vsel %vm1929, %v1921, 0.0
      %v1979 = vadd.f32 %v1919, %v1978
      %1980 = vadd.xlane.f32.xlu0 %v1979
      %v1981 = vpop.xlane.xlu0 %1980
      %v1982 = vsel %vm1929, %v1927, 0.0
      %v1983 = vadd.f32 %v1925, %v1982
      %1984 = vadd.xlane.f32.xlu0 %v1983
      %v1985 = vpop.xlane.xlu0 %1984
      %v1986 = vmul.f32 %v1847, %v1847
      %v1987 = vmul.f32 %v1849, %v1849
      %v1988 = vmul.f32 %v1853, %v1853
      %v1989 = vmul.f32 %v1855, %v1855
      %v1990 = vmul.f32 %v1859, %v1859
      %v1991 = vmul.f32 %v1861, %v1861
      %v1992 = vmul.f32 %v1865, %v1865
      %v1993 = vmul.f32 %v1867, %v1867
      %v1994 = vmul.f32 %v1871, %v1871
      %v1995 = vmul.f32 %v1873, %v1873
      %v1996 = vmul.f32 %v1877, %v1877
      %v1997 = vmul.f32 %v1879, %v1879
      %v1998 = vmul.f32 %v1883, %v1883
      %v1999 = vmul.f32 %v1885, %v1885
      %v2000 = vmul.f32 %v1889, %v1889
      %v2001 = vmul.f32 %v1891, %v1891
      %v2002 = vmul.f32 %v1895, %v1895
      %v2003 = vmul.f32 %v1897, %v1897
      %v2004 = vmul.f32 %v1901, %v1901
      %v2005 = vmul.f32 %v1903, %v1903
      %v2006 = vmul.f32 %v1907, %v1907
      %v2007 = vmul.f32 %v1909, %v1909
      %v2008 = vmul.f32 %v1913, %v1913
      %v2009 = vmul.f32 %v1915, %v1915
      %v2010 = vmul.f32 %v1919, %v1919
      %v2011 = vmul.f32 %v1921, %v1921
      %v2012 = vmul.f32 %v1925, %v1925
      %v2013 = vmul.f32 %v1927, %v1927
      %v2014 = vsel %vm1929, %v1987, 0.0
      %v2015 = vadd.f32 %v1986, %v2014
      %2016 = vadd.xlane.f32.xlu0 %v2015
      %v2017 = vpop.xlane.xlu0 %2016
      %v2018 = vsel %vm1929, %v1989, 0.0
      %v2019 = vadd.f32 %v1988, %v2018
      %2020 = vadd.xlane.f32.xlu0 %v2019
      %v2021 = vpop.xlane.xlu0 %2020
      %v2022 = vsel %vm1929, %v1991, 0.0
      %v2023 = vadd.f32 %v1990, %v2022
      %2024 = vadd.xlane.f32.xlu0 %v2023
      %v2025 = vpop.xlane.xlu0 %2024
      %v2026 = vsel %vm1929, %v1993, 0.0
      %v2027 = vadd.f32 %v1992, %v2026
      %2028 = vadd.xlane.f32.xlu0 %v2027
      %v2029 = vpop.xlane.xlu0 %2028
      %v2030 = vsel %vm1929, %v1995, 0.0
      %v2031 = vadd.f32 %v1994, %v2030
      %2032 = vadd.xlane.f32.xlu0 %v2031
      %v2033 = vpop.xlane.xlu0 %2032
      %v2034 = vsel %vm1929, %v1997, 0.0
      %v2035 = vadd.f32 %v1996, %v2034
      %2036 = vadd.xlane.f32.xlu0 %v2035
      %v2037 = vpop.xlane.xlu0 %2036
      %v2038 = vsel %vm1929, %v1999, 0.0
      %v2039 = vadd.f32 %v1998, %v2038
      %2040 = vadd.xlane.f32.xlu0 %v2039
      %v2041 = vpop.xlane.xlu0 %2040
      %v2042 = vsel %vm1929, %v2001, 0.0
      %v2043 = vadd.f32 %v2000, %v2042
      %2044 = vadd.xlane.f32.xlu0 %v2043
      %v2045 = vpop.xlane.xlu0 %2044
      %v2046 = vsel %vm1929, %v2003, 0.0
      %v2047 = vadd.f32 %v2002, %v2046
      %2048 = vadd.xlane.f32.xlu0 %v2047
      %v2049 = vpop.xlane.xlu0 %2048
      %v2050 = vsel %vm1929, %v2005, 0.0
      %v2051 = vadd.f32 %v2004, %v2050
      %2052 = vadd.xlane.f32.xlu0 %v2051
      %v2053 = vpop.xlane.xlu0 %2052
      %v2054 = vsel %vm1929, %v2007, 0.0
      %v2055 = vadd.f32 %v2006, %v2054
      %2056 = vadd.xlane.f32.xlu0 %v2055
      %v2057 = vpop.xlane.xlu0 %2056
      %v2058 = vsel %vm1929, %v2009, 0.0
      %v2059 = vadd.f32 %v2008, %v2058
      %2060 = vadd.xlane.f32.xlu0 %v2059
      %v2061 = vpop.xlane.xlu0 %2060
      %v2062 = vsel %vm1929, %v2011, 0.0
      %v2063 = vadd.f32 %v2010, %v2062
      %2064 = vadd.xlane.f32.xlu0 %v2063
      %v2065 = vpop.xlane.xlu0 %2064
      %v2066 = vsel %vm1929, %v2013, 0.0
      %v2067 = vadd.f32 %v2012, %v2066
      %2068 = vadd.xlane.f32.xlu0 %v2067
      %v2069 = vpop.xlane.xlu0 %2068
      %v2070 = vmul.f32 %v1933, 0.0051020407
      %v2071 = vmul.f32 %v1937, 0.0051020407
      %v2072 = vmul.f32 %v1941, 0.0051020407
      %v2073 = vmul.f32 %v1945, 0.0051020407
      %v2074 = vmul.f32 %v1949, 0.0051020407
      %v2075 = vmul.f32 %v1953, 0.0051020407
      %v2076 = vmul.f32 %v1957, 0.0051020407
      %v2077 = vmul.f32 %v1961, 0.0051020407
      %v2078 = vmul.f32 %v1965, 0.0051020407
      %v2079 = vmul.f32 %v1969, 0.0051020407
      %v2080 = vmul.f32 %v1973, 0.0051020407
      %v2081 = vmul.f32 %v1977, 0.0051020407
      %v2082 = vmul.f32 %v1981, 0.0051020407
      %v2083 = vmul.f32 %v1985, 0.0051020407
      %v2084 = vmul.f32 %v2017, 0.0051020407
      %v2085 = vmul.f32 %v2021, 0.0051020407
      %v2086 = vmul.f32 %v2025, 0.0051020407
      %v2087 = vmul.f32 %v2029, 0.0051020407
      %v2088 = vmul.f32 %v2033, 0.0051020407
      %v2089 = vmul.f32 %v2037, 0.0051020407
      %v2090 = vmul.f32 %v2041, 0.0051020407
      %v2091 = vmul.f32 %v2045, 0.0051020407
      %v2092 = vmul.f32 %v2049, 0.0051020407
      %v2093 = vmul.f32 %v2053, 0.0051020407
      %v2094 = vmul.f32 %v2057, 0.0051020407
      %v2095 = vmul.f32 %v2061, 0.0051020407
      %v2096 = vmul.f32 %v2065, 0.0051020407
      %v2097 = vmul.f32 %v2069, 0.0051020407
      %v2098 = vmul.f32 %v2070, %v2070
      %v2099 = vmul.f32 %v2071, %v2071
      %v2100 = vmul.f32 %v2072, %v2072
      %v2101 = vmul.f32 %v2073, %v2073
      %v2102 = vmul.f32 %v2074, %v2074
      %v2103 = vmul.f32 %v2075, %v2075
      %v2104 = vmul.f32 %v2076, %v2076
      %v2105 = vmul.f32 %v2077, %v2077
      %v2106 = vmul.f32 %v2078, %v2078
      %v2107 = vmul.f32 %v2079, %v2079
      %v2108 = vmul.f32 %v2080, %v2080
      %v2109 = vmul.f32 %v2081, %v2081
      %v2110 = vmul.f32 %v2082, %v2082
      %v2111 = vmul.f32 %v2083, %v2083
      %v2112 = vsub.f32 %v2084, %v2098
      %v2113 = vsub.f32 %v2085, %v2099
      %v2114 = vsub.f32 %v2086, %v2100
      %v2115 = vsub.f32 %v2087, %v2101
      %v2116 = vsub.f32 %v2088, %v2102
      %v2117 = vsub.f32 %v2089, %v2103
      %v2118 = vsub.f32 %v2090, %v2104
      %v2119 = vsub.f32 %v2091, %v2105
      %v2120 = vsub.f32 %v2092, %v2106
      %v2121 = vsub.f32 %v2093, %v2107
      %v2122 = vsub.f32 %v2094, %v2108
      %v2123 = vsub.f32 %v2095, %v2109
      %v2124 = vsub.f32 %v2096, %v2110
      %v2125 = vsub.f32 %v2097, %v2111
      %v2126 = vmax.f32 %v2112, 0.0
      %v2127 = vmax.f32 %v2113, 0.0
      %v2128 = vmax.f32 %v2114, 0.0
      %v2129 = vmax.f32 %v2115, 0.0
      %v2130 = vmax.f32 %v2116, 0.0
      %v2131 = vmax.f32 %v2117, 0.0
      %v2132 = vmax.f32 %v2118, 0.0
      %v2133 = vmax.f32 %v2119, 0.0
      %v2134 = vmax.f32 %v2120, 0.0
      %v2135 = vmax.f32 %v2121, 0.0
      %v2136 = vmax.f32 %v2122, 0.0
      %v2137 = vmax.f32 %v2123, 0.0
      %v2138 = vmax.f32 %v2124, 0.0
      %v2139 = vmax.f32 %v2125, 0.0
      %v2140 = vadd.f32 %v2126, 0.001
      %v2141 = vadd.f32 %v2127, 0.001
      %v2142 = vadd.f32 %v2128, 0.001
      %v2143 = vadd.f32 %v2129, 0.001
      %v2144 = vadd.f32 %v2130, 0.001
      %v2145 = vadd.f32 %v2131, 0.001
      %v2146 = vadd.f32 %v2132, 0.001
      %v2147 = vadd.f32 %v2133, 0.001
      %v2148 = vadd.f32 %v2134, 0.001
      %v2149 = vadd.f32 %v2135, 0.001
      %v2150 = vadd.f32 %v2136, 0.001
      %v2151 = vadd.f32 %v2137, 0.001
      %v2152 = vadd.f32 %v2138, 0.001
      %v2153 = vadd.f32 %v2139, 0.001
      %v2154 = vrsqrt.pop %v2140
      %v2155 = vrsqrt.pop %v2141
      %v2156 = vrsqrt.pop %v2142
      %v2157 = vrsqrt.pop %v2143
      %v2158 = vrsqrt.pop %v2144
      %v2159 = vrsqrt.pop %v2145
      %v2160 = vrsqrt.pop %v2146
      %v2161 = vrsqrt.pop %v2147
      %v2162 = vrsqrt.pop %v2148
      %v2163 = vrsqrt.pop %v2149
      %v2164 = vrsqrt.pop %v2150
      %v2165 = vrsqrt.pop %v2151
      %v2166 = vrsqrt.pop %v2152
      %v2167 = vrsqrt.pop %v2153
      %v2168 = vld [vmem:[%s262] sm:$0xff]
      %v2169 = vld [vmem:[%s262 + $0x8] sm:$0xff]
      %v2170 = vld [vmem:[%s262 + $0x10] sm:$0xff]
      %v2171 = vld [vmem:[%s262 + $0x18] sm:$0xff]
      %v2172 = vld [vmem:[%s262 + $0x20] sm:$0xff]
      %v2173 = vld [vmem:[%s262 + $0x28] sm:$0xff]
      %v2174 = vld [vmem:[%s262 + $0x30] sm:$0xff]
      %v2175 = vld [vmem:[%s262 + $0x38] sm:$0xff]
      %v2176 = vld [vmem:[%s262 + $0x40] sm:$0xff]
      %v2177 = vld [vmem:[%s262 + $0x48] sm:$0xff]
      %v2178 = vld [vmem:[%s262 + $0x50] sm:$0xff]
      %v2179 = vld [vmem:[%s262 + $0x58] sm:$0xff]
      %v2180 = vld [vmem:[%s262 + $0x60] sm:$0xff]
      %v2181 = vld [vmem:[%s262 + $0x68] sm:$0xff]
      %v2182 = vmul.f32 %v2154, %v2168
      %v2183 = vmul.f32 %v2155, %v2169
      %v2184 = vmul.f32 %v2156, %v2170
      %v2185 = vmul.f32 %v2157, %v2171
      %v2186 = vmul.f32 %v2158, %v2172
      %v2187 = vmul.f32 %v2159, %v2173
      %v2188 = vmul.f32 %v2160, %v2174
      %v2189 = vmul.f32 %v2161, %v2175
      %v2190 = vmul.f32 %v2162, %v2176
      %v2191 = vmul.f32 %v2163, %v2177
      %v2192 = vmul.f32 %v2164, %v2178
      %v2193 = vmul.f32 %v2165, %v2179
      %v2194 = vmul.f32 %v2166, %v2180
      %v2195 = vmul.f32 %v2167, %v2181
      %v2196 = vld [vmem:[%s268] sm:$0xff]
      %v2197 = vld [vmem:[%s268 + $0x8] sm:$0xff]
      %v2198 = vld [vmem:[%s268 + $0x10] sm:$0xff]
      %v2199 = vld [vmem:[%s268 + $0x18] sm:$0xff]
      %v2200 = vld [vmem:[%s268 + $0x20] sm:$0xff]
      %v2201 = vld [vmem:[%s268 + $0x28] sm:$0xff]
      %v2202 = vld [vmem:[%s268 + $0x30] sm:$0xff]
      %v2203 = vld [vmem:[%s268 + $0x38] sm:$0xff]
      %v2204 = vld [vmem:[%s268 + $0x40] sm:$0xff]
      %v2205 = vld [vmem:[%s268 + $0x48] sm:$0xff]
      %v2206 = vld [vmem:[%s268 + $0x50] sm:$0xff]
      %v2207 = vld [vmem:[%s268 + $0x58] sm:$0xff]
      %v2208 = vld [vmem:[%s268 + $0x60] sm:$0xff]
      %v2209 = vld [vmem:[%s268 + $0x68] sm:$0xff]
      %v2210 = vmul.f32 %v2070, %v2182
      %v2211 = vmul.f32 %v2071, %v2183
      %v2212 = vmul.f32 %v2072, %v2184
      %v2213 = vmul.f32 %v2073, %v2185
      %v2214 = vmul.f32 %v2074, %v2186
      %v2215 = vmul.f32 %v2075, %v2187
      %v2216 = vmul.f32 %v2076, %v2188
      %v2217 = vmul.f32 %v2077, %v2189
      %v2218 = vmul.f32 %v2078, %v2190
      %v2219 = vmul.f32 %v2079, %v2191
      %v2220 = vmul.f32 %v2080, %v2192
      %v2221 = vmul.f32 %v2081, %v2193
      %v2222 = vmul.f32 %v2082, %v2194
      %v2223 = vmul.f32 %v2083, %v2195
      %v2224 = vsub.f32 %v2196, %v2210
      %v2225 = vsub.f32 %v2197, %v2211
      %v2226 = vsub.f32 %v2198, %v2212
      %v2227 = vsub.f32 %v2199, %v2213
      %v2228 = vsub.f32 %v2200, %v2214
      %v2229 = vsub.f32 %v2201, %v2215
      %v2230 = vsub.f32 %v2202, %v2216
      %v2231 = vsub.f32 %v2203, %v2217
      %v2232 = vsub.f32 %v2204, %v2218
      %v2233 = vsub.f32 %v2205, %v2219
      %v2234 = vsub.f32 %v2206, %v2220
      %v2235 = vsub.f32 %v2207, %v2221
      %v2236 = vsub.f32 %v2208, %v2222
      %v2237 = vsub.f32 %v2209, %v2223
      %2239 = vset.pattern.permute.xlu0 0
      %2240 = vperm.xlu0 %2239, %v2182
      %v2241 = vpop.permute.xlu0 %2240
      %2244 = vset.pattern.permute.xlu0 0
      %2245 = vperm.xlu0 %2244, %v2183
      %v2246 = vpop.permute.xlu0 %2245
      %2249 = vset.pattern.permute.xlu0 0
      %2250 = vperm.xlu0 %2249, %v2184
      %v2251 = vpop.permute.xlu0 %2250
      %2254 = vset.pattern.permute.xlu0 0
      %2255 = vperm.xlu0 %2254, %v2185
      %v2256 = vpop.permute.xlu0 %2255
      %2259 = vset.pattern.permute.xlu0 0
      %2260 = vperm.xlu0 %2259, %v2186
      %v2261 = vpop.permute.xlu0 %2260
      %2264 = vset.pattern.permute.xlu0 0
      %2265 = vperm.xlu0 %2264, %v2187
      %v2266 = vpop.permute.xlu0 %2265
      %2269 = vset.pattern.permute.xlu0 0
      %2270 = vperm.xlu0 %2269, %v2188
      %v2271 = vpop.permute.xlu0 %2270
      %2274 = vset.pattern.permute.xlu0 0
      %2275 = vperm.xlu0 %2274, %v2189
      %v2276 = vpop.permute.xlu0 %2275
      %2279 = vset.pattern.permute.xlu0 0
      %2280 = vperm.xlu0 %2279, %v2190
      %v2281 = vpop.permute.xlu0 %2280
      %2284 = vset.pattern.permute.xlu0 0
      %2285 = vperm.xlu0 %2284, %v2191
      %v2286 = vpop.permute.xlu0 %2285
      %2289 = vset.pattern.permute.xlu0 0
      %2290 = vperm.xlu0 %2289, %v2192
      %v2291 = vpop.permute.xlu0 %2290
      %2294 = vset.pattern.permute.xlu0 0
      %2295 = vperm.xlu0 %2294, %v2193
      %v2296 = vpop.permute.xlu0 %2295
      %2299 = vset.pattern.permute.xlu0 0
      %2300 = vperm.xlu0 %2299, %v2194
      %v2301 = vpop.permute.xlu0 %2300
      %2304 = vset.pattern.permute.xlu0 0
      %2305 = vperm.xlu0 %2304, %v2195
      %v2306 = vpop.permute.xlu0 %2305
      %v2308 = vmul.f32 %v1847, %v2241
      %v2309 = vmul.f32 %v1849, %v2241
      %v2310 = vmul.f32 %v1853, %v2246
      %v2311 = vmul.f32 %v1855, %v2246
      %v2312 = vmul.f32 %v1859, %v2251
      %v2313 = vmul.f32 %v1861, %v2251
      %v2314 = vmul.f32 %v1865, %v2256
      %v2315 = vmul.f32 %v1867, %v2256
      %v2316 = vmul.f32 %v1871, %v2261
      %v2317 = vmul.f32 %v1873, %v2261
      %v2318 = vmul.f32 %v1877, %v2266
      %v2319 = vmul.f32 %v1879, %v2266
      %v2320 = vmul.f32 %v1883, %v2271
      %v2321 = vmul.f32 %v1885, %v2271
      %v2322 = vmul.f32 %v1889, %v2276
      %v2323 = vmul.f32 %v1891, %v2276
      %v2324 = vmul.f32 %v1895, %v2281
      %v2325 = vmul.f32 %v1897, %v2281
      %v2326 = vmul.f32 %v1901, %v2286
      %v2327 = vmul.f32 %v1903, %v2286
      %v2328 = vmul.f32 %v1907, %v2291
      %v2329 = vmul.f32 %v1909, %v2291
      %v2330 = vmul.f32 %v1913, %v2296
      %v2331 = vmul.f32 %v1915, %v2296
      %v2332 = vmul.f32 %v1919, %v2301
      %v2333 = vmul.f32 %v1921, %v2301
      %v2334 = vmul.f32 %v1925, %v2306
      %v2335 = vmul.f32 %v1927, %v2306
      %2337 = vset.pattern.permute.xlu0 0
      %2338 = vperm.xlu0 %2337, %v2224
      %v2339 = vpop.permute.xlu0 %2338
      %2342 = vset.pattern.permute.xlu0 0
      %2343 = vperm.xlu0 %2342, %v2225
      %v2344 = vpop.permute.xlu0 %2343
      %2347 = vset.pattern.permute.xlu0 0
      %2348 = vperm.xlu0 %2347, %v2226
      %v2349 = vpop.permute.xlu0 %2348
      %2352 = vset.pattern.permute.xlu0 0
      %2353 = vperm.xlu0 %2352, %v2227
      %v2354 = vpop.permute.xlu0 %2353
      %2357 = vset.pattern.permute.xlu0 0
      %2358 = vperm.xlu0 %2357, %v2228
      %v2359 = vpop.permute.xlu0 %2358
      %2362 = vset.pattern.permute.xlu0 0
      %2363 = vperm.xlu0 %2362, %v2229
      %v2364 = vpop.permute.xlu0 %2363
      %2367 = vset.pattern.permute.xlu0 0
      %2368 = vperm.xlu0 %2367, %v2230
      %v2369 = vpop.permute.xlu0 %2368
      %2372 = vset.pattern.permute.xlu0 0
      %2373 = vperm.xlu0 %2372, %v2231
      %v2374 = vpop.permute.xlu0 %2373
      %2377 = vset.pattern.permute.xlu0 0
      %2378 = vperm.xlu0 %2377, %v2232
      %v2379 = vpop.permute.xlu0 %2378
      %2382 = vset.pattern.permute.xlu0 0
      %2383 = vperm.xlu0 %2382, %v2233
      %v2384 = vpop.permute.xlu0 %2383
      %2387 = vset.pattern.permute.xlu0 0
      %2388 = vperm.xlu0 %2387, %v2234
      %v2389 = vpop.permute.xlu0 %2388
      %2392 = vset.pattern.permute.xlu0 0
      %2393 = vperm.xlu0 %2392, %v2235
      %v2394 = vpop.permute.xlu0 %2393
      %2397 = vset.pattern.permute.xlu0 0
      %2398 = vperm.xlu0 %2397, %v2236
      %v2399 = vpop.permute.xlu0 %2398
      %2402 = vset.pattern.permute.xlu0 0
      %2403 = vperm.xlu0 %2402, %v2237
      %v2404 = vpop.permute.xlu0 %2403
      %v2406 = vadd.f32 %v2308, %v2339
      %v2407 = vadd.f32 %v2309, %v2339
      %v2408 = vadd.f32 %v2310, %v2344
      %v2409 = vadd.f32 %v2311, %v2344
      %v2410 = vadd.f32 %v2312, %v2349
      %v2411 = vadd.f32 %v2313, %v2349
      %v2412 = vadd.f32 %v2314, %v2354
      %v2413 = vadd.f32 %v2315, %v2354
      %v2414 = vadd.f32 %v2316, %v2359
      %v2415 = vadd.f32 %v2317, %v2359
      %v2416 = vadd.f32 %v2318, %v2364
      %v2417 = vadd.f32 %v2319, %v2364
      %v2418 = vadd.f32 %v2320, %v2369
      %v2419 = vadd.f32 %v2321, %v2369
      %v2420 = vadd.f32 %v2322, %v2374
      %v2421 = vadd.f32 %v2323, %v2374
      %v2422 = vadd.f32 %v2324, %v2379
      %v2423 = vadd.f32 %v2325, %v2379
      %v2424 = vadd.f32 %v2326, %v2384
      %v2425 = vadd.f32 %v2327, %v2384
      %v2426 = vadd.f32 %v2328, %v2389
      %v2427 = vadd.f32 %v2329, %v2389
      %v2428 = vadd.f32 %v2330, %v2394
      %v2429 = vadd.f32 %v2331, %v2394
      %v2430 = vadd.f32 %v2332, %v2399
      %v2431 = vadd.f32 %v2333, %v2399
      %v2432 = vadd.f32 %v2334, %v2404
      %v2433 = vadd.f32 %v2335, %v2404
      %2434 = vst [vmem:[%s275] sm:$0xff] %v2406
      %2435 = vst.msk [vmem:[%s275 + $0x8] sm:$0xff] %vm1929, %v2407
      %2436 = vst [vmem:[%s275 + $0x10] sm:$0xff] %v2408
      %2437 = vst.msk [vmem:[%s275 + $0x18] sm:$0xff] %vm1929, %v2409
      %2438 = vst [vmem:[%s275 + $0x20] sm:$0xff] %v2410
      %2439 = vst.msk [vmem:[%s275 + $0x28] sm:$0xff] %vm1929, %v2411
      %2440 = vst [vmem:[%s275 + $0x30] sm:$0xff] %v2412
      %2441 = vst.msk [vmem:[%s275 + $0x38] sm:$0xff] %vm1929, %v2413
      %2442 = vst [vmem:[%s275 + $0x40] sm:$0xff] %v2414
      %2443 = vst.msk [vmem:[%s275 + $0x48] sm:$0xff] %vm1929, %v2415
      %2444 = vst [vmem:[%s275 + $0x50] sm:$0xff] %v2416
      %2445 = vst.msk [vmem:[%s275 + $0x58] sm:$0xff] %vm1929, %v2417
      %2446 = vst [vmem:[%s275 + $0x60] sm:$0xff] %v2418
      %2447 = vst.msk [vmem:[%s275 + $0x68] sm:$0xff] %vm1929, %v2419
      %2448 = vst [vmem:[%s275 + $0x70] sm:$0xff] %v2420
      %2449 = vst.msk [vmem:[%s275 + $0x78] sm:$0xff] %vm1929, %v2421
      %2450 = vst [vmem:[%s275 + $0x80] sm:$0xff] %v2422
      %2451 = vst.msk [vmem:[%s275 + $0x88] sm:$0xff] %vm1929, %v2423
      %2452 = vst [vmem:[%s275 + $0x90] sm:$0xff] %v2424
      %2453 = vst.msk [vmem:[%s275 + $0x98] sm:$0xff] %vm1929, %v2425
      %2454 = vst [vmem:[%s275 + $0xa0] sm:$0xff] %v2426
      %2455 = vst.msk [vmem:[%s275 + $0xa8] sm:$0xff] %vm1929, %v2427
      %2456 = vst [vmem:[%s275 + $0xb0] sm:$0xff] %v2428
      %2457 = vst.msk [vmem:[%s275 + $0xb8] sm:$0xff] %vm1929, %v2429
      %2458 = vst [vmem:[%s275 + $0xc0] sm:$0xff] %v2430
      %2459 = vst.msk [vmem:[%s275 + $0xc8] sm:$0xff] %vm1929, %v2431
      %2460 = vst [vmem:[%s275 + $0xd0] sm:$0xff] %v2432
      %2461 = vst.msk [vmem:[%s275 + $0xd8] sm:$0xff] %vm1929, %v2433
      %s2462 = smul.u32 14, %s16
      %p2463 = scmp.lt.s32.totalorder %s2462, 27
      %s2464 = scalar_select %p2463, %s2462, 27
      %s2465 = smul.addr %s2464, 2
      %s2466 = smul.addr %s2465, 8
      %s2467 = scalar_lea.vmem %s5, %s2466
      // Predicated region
      $region41: #{forward.1} parent=39 // pred_check
        %p2468 = pneg %p154
      $region42: #{forward.1} parent=39 // pred_check_branch
        %2470 = sbr.rel (%p2468) target = $region44
      $region43: #{forward.1} parent=39 // pred_region
        %s2471 = smul.u32 14, %s16
      $region44: #{forward.1} parent=39 // pred_fallthru
        _
    $region40: #{forward.1} parent=5 // pred_fallthru
      _
    %p2472 = scmp.le.s32.totalorder 2, %s11
    // Predicated region
    $region45: #{forward.1} parent=5 // pred_check
      %p2473 = pneg %p2472
    $region46: #{forward.1} parent=5 // pred_check_branch
      %2475 = sbr.rel (%p2473) target = $region48
    $region47: #{forward.1} parent=5 // pred_region
      %s2476 = ssub.s32 %s11, 2
      // Predicated region
      $region49: #{forward.1} parent=47 // pred_check
        %p2477 = pneg %p160
      $region50: #{forward.1} parent=47 // pred_check_branch
        %2479 = sbr.rel (%p2477) target = $region52
      $region51: #{forward.1} parent=47 // pred_region
        %s2480 = smul.u32 14, %s17
        %p2481 = scmp.lt.s32.totalorder %s2480, 27
        %s2482 = scalar_select %p2481, %s2480, 27
        %s2483 = smul.addr %s2482, 2
        %s2484 = smul.addr %s2483, 8
        %s2485 = scalar_lea.vmem %s5, %s2484
      $region52: #{forward.1} parent=47 // pred_fallthru
        _
    $region48: #{forward.1} parent=5 // pred_fallthru
      _
  $region6: #{forward.1} parent=0 // loop_footer
    %s15 = sadd.s32 1, %s11
  $region7: #{forward.1} parent=0 // loop_footer_branch
    %10 = sbr.rel target = $region3
  $region8: #{forward.1} parent=0 // loop_exit
    _

</llo_original>
